<compile_context>
chip_gen: v7x
topology: tpu7x:2x2x1
jax: 0.10.0
libtpu: 0.0.40
codegen_flags: <defaults>
</compile_context>

<pallas_src>
import jax
import jax.numpy as jnp
from jax import lax
from jax.experimental import pallas as pl
from jax.experimental.pallas import tpu as pltpu


# Model configuration (all hidden dims > 0 => the "h_dim6 > 0" branch of both
# Encoder.forward and Generator.forward is taken).
X_DIM = 32
H1, H2, H3, H4, H5, H6 = 64, 64, 32, 32, 16, 16

LANE = 128            # padded feature width for every layer
N_LAYERS = 11         # 12 nn.Linear layers with enc.fc6 / dec.fc6 fused (identity between them)

# (in_dim, out_dim) for the 12 original nn.Linear layers, forward order.
_LAYER_DIMS = [
    (X_DIM, H1), (H1, H2), (H2, H3), (H3, H4), (H4, H5), (H5, H6),   # encoder fc1..fc6
    (H6, H5), (H5, H4), (H4, H3), (H3, H2), (H2, H1), (H1, X_DIM),   # decoder fc6..fc1
]

# ReLU flags for the ORIGINAL 12-layer stack (reference): every layer except
# encoder.fc6 (index 5) and decoder.fc1 (index 11).
_RELU_REF = [True, True, True, True, True, False,
             True, True, True, True, True, False]

# ReLU flags for the FUSED 11-layer stack: the merged (enc.fc6 o dec.fc6) layer is
# followed by ReLU (decoder.fc6's activation); only the final layer has none.
_RELU_FUSED = [True] * 10 + [False]


def ae_kernel(x_ref, w_ref, out_ref):
    """Fused 11-layer MLP (encoder + decoder) on one batch tile.

    x_ref:   (TB, X_DIM)             bf16  unpadded input rows
    w_ref:   (N_LAYERS, LANE, LANE)  bf16  VMEM-resident padded weights; row LANE-1
                                           of each layer holds the bias and a 1.0 at
                                           lane LANE-1 (ones-lane bias fold)
    out_ref: (TB, LANE)              bf16  lane-dense padded output
    """
    x = x_ref[...]                                           # (TB, 32) bf16
    tb = x.shape[0]
    # Pad to 128 lanes in-kernel.  Lane LANE-1 carries a constant 1.0 so each layer's
    # bias (stored in weight row LANE-1) is applied by the matmul itself; the ones
    # lane self-propagates because W[LANE-1, LANE-1] = 1 and ReLU(1) = 1.
    pad_iota = lax.broadcasted_iota(jnp.int32, (tb, LANE - X_DIM), 1)
    pad = (pad_iota == (LANE - X_DIM - 1)).astype(jnp.bfloat16)
    h = jnp.concatenate([x, pad], axis=-1)                   # (TB, 128) bf16

    for i in range(N_LAYERS):                                # fully unrolled
        acc = jnp.dot(h, w_ref[i], preferred_element_type=jnp.float32)   # MXU, f32 acc
        if _RELU_FUSED[i]:
            acc = jnp.maximum(acc, 0.0)
        h = acc.astype(jnp.bfloat16)                         # bf16 between layers

    out_ref[...] = h                                         # lane-dense bf16 store


def init_params(key):
    """Deterministic synthetic parameters with the shapes nn.Linear implies."""
    params = []
    for (din, dout) in _LAYER_DIMS:
        key, kw, kb = jax.random.split(key, 3)
        # PyTorch stores W as (out, in); build that way then transpose to (in, out).
        w_torch_layout = jax.random.normal(kw, (dout, din), jnp.float32) * 0.05
        b = jax.random.normal(kb, (dout,), jnp.float32) * 0.05
        params.append((jnp.transpose(w_torch_layout), b))
    return params


def fuse_and_pack(params):
    """Compose enc.fc6 with dec.fc6 (f32), fold biases into weight row LANE-1, pad to
    (LANE, LANE), stack into one (N_LAYERS, LANE, LANE) bf16 tensor."""
    fused = list(params[:5])
    (w5, b5), (w6, b6) = params[5], params[6]
    fused.append((w5 @ w6, b5 @ w6 + b6))          # identity between them -> exact compose
    fused += list(params[7:])
    assert len(fused) == N_LAYERS

    w_pack = jnp.zeros((N_LAYERS, LANE, LANE), jnp.float32)
    for i, (w, b) in enumerate(fused):
        din, dout = w.shape
        w_pack = w_pack.at[i, :din, :dout].set(w)
        w_pack = w_pack.at[i, LANE - 1, :dout].set(b)        # bias row (ones-lane fold)
        w_pack = w_pack.at[i, LANE - 1, LANE - 1].set(1.0)   # keep ones lane alive
    return w_pack.astype(jnp.bfloat16)


def _choose_tile_b(batch):
    """Biggest sensible batch tile: whole batch in one tile when small; for large
    batches, the largest tile (<=1024) that still gives >=4 grid steps so the
    BlockSpec pipeline has a steady state and v7x's 2 TCs both get >=2 steps."""
    bp16 = -(-batch // 16) * 16          # round up to bf16 sublane packing
    if bp16 <= 1024:
        return bp16
    for cand in (1024, 512, 256):
        if bp16 >= 4 * cand:
            return cand
    return 256


def _ae_forward(x, w_pack):
    """Full AE forward (encoder + decoder) in one pallas_call, batch-tiled."""
    B = x.shape[0]
    tile_b = _choose_tile_b(B)
    n_tiles = pl.cdiv(B, tile_b)
    bp = n_tiles * tile_b

    # Only the batch dim is padded here (feature pad happens in-kernel); bf16 input.
    xp = jnp.zeros((bp, X_DIM), jnp.bfloat16).at[:B].set(x.astype(jnp.bfloat16))

    # Report the padded MXU work actually executed.
    flops = 2 * bp * LANE * LANE * N_LAYERS
    bytes_accessed = int(w_pack.size * 2 + xp.size * 2 + bp * LANE * 2)

    out_padded = pl.pallas_call(
        ae_kernel,
        out_shape=jax.ShapeDtypeStruct((bp, LANE), jnp.bfloat16),
        grid=(n_tiles,),
        in_specs=[
            pl.BlockSpec((tile_b, X_DIM), lambda i: (i, 0)),             # x tile (unpadded lanes)
            pl.BlockSpec((N_LAYERS, LANE, LANE), lambda i: (0, 0, 0)),   # weights, VMEM-resident
        ],
        out_specs=pl.BlockSpec((tile_b, LANE), lambda i: (i, 0)),
        compiler_params=pltpu.CompilerParams(
            dimension_semantics=("parallel",)),
        cost_estimate=pl.CostEstimate(
            flops=flops, transcendentals=0, bytes_accessed=bytes_accessed),
    )(xp, w_pack)

    return out_padded[:B, :X_DIM].astype(jnp.float32)


ae_forward = jax.jit(_ae_forward)


def ae_forward_ref(x, params):
    """Pure-JAX f32 reference (original 12-layer stack) for correctness checking."""
    h = x
    for (w, b), relu in zip(params, _RELU_REF):
        h = h @ w + b
        if relu:
            h = jnp.maximum(h, 0.0)
    return h


if __name__ == "__main__":
    key = jax.random.PRNGKey(0)
    key, kx = jax.random.split(key)
    BATCH = 200                                   # exercises batch-pad path (200 -> 208)
    x = jax.random.normal(kx, (BATCH, X_DIM), jnp.float32)

    params = init_params(key)
    w_pack = fuse_and_pack(params)

    out = jax.block_until_ready(ae_forward(x, w_pack))
    ref = jax.block_until_ready(ae_forward_ref(x, params))

    assert out.shape == (BATCH, X_DIM)
    # bf16 MXU operands / bf16 biases / bf16 output => looser tolerance than pure f32.
    assert jnp.allclose(out, ref, atol=2e-2, rtol=2e-2), "mismatch vs reference"

    print("KERNEL_OK")
</pallas_src>

<mosaic_0001>
module attributes {stable_mosaic.version = 11 : i64} {
  func.func @ae_kernel(%arg0: i32, %arg1: memref<208x32xbf16, #tpu.memory_space<vmem>>, %arg2: memref<11x128x128xbf16, #tpu.memory_space<vmem>>, %arg3: memref<208x128xbf16, #tpu.memory_space<vmem>>) attributes {dimension_semantics = [#tpu.dimension_semantics<parallel>], iteration_bounds = array<i64: 1>, scalar_prefetch = 0 : i64, scratch_operands = 0 : i64, tpu.core_type = #tpu.core_type<tc>, window_params = [{transform_indices = @transform_0, window_bounds = array<i64: 208, 32>}, {pipeline_mode = #tpu.pipeline_mode<synchronous>, transform_indices = @transform_1, window_bounds = array<i64: 11, 128, 128>}, {transform_indices = @transform_2, window_bounds = array<i64: 208, 128>}]} {
    %c0 = arith.constant 0 : index
    %c0_0 = arith.constant 0 : index
    %0 = vector.load %arg1[%c0, %c0_0] : memref<208x32xbf16, #tpu.memory_space<vmem>>, vector<208x32xbf16>
    %1 = tpu.iota {dimensions = array<i32: 1>} : vector<208x96xi32>
    %c95_i32 = arith.constant 95 : i32
    %2 = vector.broadcast %c95_i32 : i32 to vector<208x96xi32>
    %3 = arith.cmpi eq, %1, %2 : vector<208x96xi32>
    %4 = arith.extui %3 : vector<208x96xi1> to vector<208x96xi32>
    %5 = arith.sitofp %4 : vector<208x96xi32> to vector<208x96xf32>
    %6 = arith.truncf %5 : vector<208x96xf32> to vector<208x96xbf16>
    %7 = tpu.concatenate %0, %6 in 1 : vector<208x32xbf16>, vector<208x96xbf16> -> vector<208x128xbf16>
    %c0_1 = arith.constant 0 : index
    %c0_2 = arith.constant 0 : index
    %c0_3 = arith.constant 0 : index
    %8 = vector.load %arg2[%c0_1, %c0_2, %c0_3] : memref<11x128x128xbf16, #tpu.memory_space<vmem>>, vector<1x128x128xbf16>
    %9 = vector.shape_cast %8 : vector<1x128x128xbf16> to vector<128x128xbf16>
    %cst = arith.constant dense<0.000000e+00> : vector<208x128xf32>
    %10 = tpu.matmul %7, %9, %cst {dimension_numbers = #tpu.dot_dimension_numbers<[1], [0], [0], [1], [0, 0, 1, 1], [], []>} : vector<208x128xbf16>, vector<128x128xbf16>, vector<208x128xf32> -> vector<208x128xf32>
    %cst_4 = arith.constant 0.000000e+00 : f32
    %11 = vector.broadcast %cst_4 : f32 to vector<208x128xf32>
    %12 = arith.maximumf %10, %11 : vector<208x128xf32>
    %13 = arith.truncf %12 : vector<208x128xf32> to vector<208x128xbf16>
    %c1 = arith.constant 1 : index
    %c0_5 = arith.constant 0 : index
    %c0_6 = arith.constant 0 : index
    %14 = vector.load %arg2[%c1, %c0_5, %c0_6] : memref<11x128x128xbf16, #tpu.memory_space<vmem>>, vector<1x128x128xbf16>
    %15 = vector.shape_cast %14 : vector<1x128x128xbf16> to vector<128x128xbf16>
    %cst_7 = arith.constant dense<0.000000e+00> : vector<208x128xf32>
    %16 = tpu.matmul %13, %15, %cst_7 {dimension_numbers = #tpu.dot_dimension_numbers<[1], [0], [0], [1], [0, 0, 1, 1], [], []>} : vector<208x128xbf16>, vector<128x128xbf16>, vector<208x128xf32> -> vector<208x128xf32>
    %cst_8 = arith.constant 0.000000e+00 : f32
    %17 = vector.broadcast %cst_8 : f32 to vector<208x128xf32>
    %18 = arith.maximumf %16, %17 : vector<208x128xf32>
    %19 = arith.truncf %18 : vector<208x128xf32> to vector<208x128xbf16>
    %c2 = arith.constant 2 : index
    %c0_9 = arith.constant 0 : index
    %c0_10 = arith.constant 0 : index
    %20 = vector.load %arg2[%c2, %c0_9, %c0_10] : memref<11x128x128xbf16, #tpu.memory_space<vmem>>, vector<1x128x128xbf16>
    %21 = vector.shape_cast %20 : vector<1x128x128xbf16> to vector<128x128xbf16>
    %cst_11 = arith.constant dense<0.000000e+00> : vector<208x128xf32>
    %22 = tpu.matmul %19, %21, %cst_11 {dimension_numbers = #tpu.dot_dimension_numbers<[1], [0], [0], [1], [0, 0, 1, 1], [], []>} : vector<208x128xbf16>, vector<128x128xbf16>, vector<208x128xf32> -> vector<208x128xf32>
    %cst_12 = arith.constant 0.000000e+00 : f32
    %23 = vector.broadcast %cst_12 : f32 to vector<208x128xf32>
    %24 = arith.maximumf %22, %23 : vector<208x128xf32>
    %25 = arith.truncf %24 : vector<208x128xf32> to vector<208x128xbf16>
    %c3 = arith.constant 3 : index
    %c0_13 = arith.constant 0 : index
    %c0_14 = arith.constant 0 : index
    %26 = vector.load %arg2[%c3, %c0_13, %c0_14] : memref<11x128x128xbf16, #tpu.memory_space<vmem>>, vector<1x128x128xbf16>
    %27 = vector.shape_cast %26 : vector<1x128x128xbf16> to vector<128x128xbf16>
    %cst_15 = arith.constant dense<0.000000e+00> : vector<208x128xf32>
    %28 = tpu.matmul %25, %27, %cst_15 {dimension_numbers = #tpu.dot_dimension_numbers<[1], [0], [0], [1], [0, 0, 1, 1], [], []>} : vector<208x128xbf16>, vector<128x128xbf16>, vector<208x128xf32> -> vector<208x128xf32>
    %cst_16 = arith.constant 0.000000e+00 : f32
    %29 = vector.broadcast %cst_16 : f32 to vector<208x128xf32>
    %30 = arith.maximumf %28, %29 : vector<208x128xf32>
    %31 = arith.truncf %30 : vector<208x128xf32> to vector<208x128xbf16>
    %c4 = arith.constant 4 : index
    %c0_17 = arith.constant 0 : index
    %c0_18 = arith.constant 0 : index
    %32 = vector.load %arg2[%c4, %c0_17, %c0_18] : memref<11x128x128xbf16, #tpu.memory_space<vmem>>, vector<1x128x128xbf16>
    %33 = vector.shape_cast %32 : vector<1x128x128xbf16> to vector<128x128xbf16>
    %cst_19 = arith.constant dense<0.000000e+00> : vector<208x128xf32>
    %34 = tpu.matmul %31, %33, %cst_19 {dimension_numbers = #tpu.dot_dimension_numbers<[1], [0], [0], [1], [0, 0, 1, 1], [], []>} : vector<208x128xbf16>, vector<128x128xbf16>, vector<208x128xf32> -> vector<208x128xf32>
    %cst_20 = arith.constant 0.000000e+00 : f32
    %35 = vector.broadcast %cst_20 : f32 to vector<208x128xf32>
    %36 = arith.maximumf %34, %35 : vector<208x128xf32>
    %37 = arith.truncf %36 : vector<208x128xf32> to vector<208x128xbf16>
    %c5 = arith.constant 5 : index
    %c0_21 = arith.constant 0 : index
    %c0_22 = arith.constant 0 : index
    %38 = vector.load %arg2[%c5, %c0_21, %c0_22] : memref<11x128x128xbf16, #tpu.memory_space<vmem>>, vector<1x128x128xbf16>
    %39 = vector.shape_cast %38 : vector<1x128x128xbf16> to vector<128x128xbf16>
    %cst_23 = arith.constant dense<0.000000e+00> : vector<208x128xf32>
    %40 = tpu.matmul %37, %39, %cst_23 {dimension_numbers = #tpu.dot_dimension_numbers<[1], [0], [0], [1], [0, 0, 1, 1], [], []>} : vector<208x128xbf16>, vector<128x128xbf16>, vector<208x128xf32> -> vector<208x128xf32>
    %cst_24 = arith.constant 0.000000e+00 : f32
    %41 = vector.broadcast %cst_24 : f32 to vector<208x128xf32>
    %42 = arith.maximumf %40, %41 : vector<208x128xf32>
    %43 = arith.truncf %42 : vector<208x128xf32> to vector<208x128xbf16>
    %c6 = arith.constant 6 : index
    %c0_25 = arith.constant 0 : index
    %c0_26 = arith.constant 0 : index
    %44 = vector.load %arg2[%c6, %c0_25, %c0_26] : memref<11x128x128xbf16, #tpu.memory_space<vmem>>, vector<1x128x128xbf16>
    %45 = vector.shape_cast %44 : vector<1x128x128xbf16> to vector<128x128xbf16>
    %cst_27 = arith.constant dense<0.000000e+00> : vector<208x128xf32>
    %46 = tpu.matmul %43, %45, %cst_27 {dimension_numbers = #tpu.dot_dimension_numbers<[1], [0], [0], [1], [0, 0, 1, 1], [], []>} : vector<208x128xbf16>, vector<128x128xbf16>, vector<208x128xf32> -> vector<208x128xf32>
    %cst_28 = arith.constant 0.000000e+00 : f32
    %47 = vector.broadcast %cst_28 : f32 to vector<208x128xf32>
    %48 = arith.maximumf %46, %47 : vector<208x128xf32>
    %49 = arith.truncf %48 : vector<208x128xf32> to vector<208x128xbf16>
    %c7 = arith.constant 7 : index
    %c0_29 = arith.constant 0 : index
    %c0_30 = arith.constant 0 : index
    %50 = vector.load %arg2[%c7, %c0_29, %c0_30] : memref<11x128x128xbf16, #tpu.memory_space<vmem>>, vector<1x128x128xbf16>
    %51 = vector.shape_cast %50 : vector<1x128x128xbf16> to vector<128x128xbf16>
    %cst_31 = arith.constant dense<0.000000e+00> : vector<208x128xf32>
    %52 = tpu.matmul %49, %51, %cst_31 {dimension_numbers = #tpu.dot_dimension_numbers<[1], [0], [0], [1], [0, 0, 1, 1], [], []>} : vector<208x128xbf16>, vector<128x128xbf16>, vector<208x128xf32> -> vector<208x128xf32>
    %cst_32 = arith.constant 0.000000e+00 : f32
    %53 = vector.broadcast %cst_32 : f32 to vector<208x128xf32>
    %54 = arith.maximumf %52, %53 : vector<208x128xf32>
    %55 = arith.truncf %54 : vector<208x128xf32> to vector<208x128xbf16>
    %c8 = arith.constant 8 : index
    %c0_33 = arith.constant 0 : index
    %c0_34 = arith.constant 0 : index
    %56 = vector.load %arg2[%c8, %c0_33, %c0_34] : memref<11x128x128xbf16, #tpu.memory_space<vmem>>, vector<1x128x128xbf16>
    %57 = vector.shape_cast %56 : vector<1x128x128xbf16> to vector<128x128xbf16>
    %cst_35 = arith.constant dense<0.000000e+00> : vector<208x128xf32>
    %58 = tpu.matmul %55, %57, %cst_35 {dimension_numbers = #tpu.dot_dimension_numbers<[1], [0], [0], [1], [0, 0, 1, 1], [], []>} : vector<208x128xbf16>, vector<128x128xbf16>, vector<208x128xf32> -> vector<208x128xf32>
    %cst_36 = arith.constant 0.000000e+00 : f32
    %59 = vector.broadcast %cst_36 : f32 to vector<208x128xf32>
    %60 = arith.maximumf %58, %59 : vector<208x128xf32>
    %61 = arith.truncf %60 : vector<208x128xf32> to vector<208x128xbf16>
    %c9 = arith.constant 9 : index
    %c0_37 = arith.constant 0 : index
    %c0_38 = arith.constant 0 : index
    %62 = vector.load %arg2[%c9, %c0_37, %c0_38] : memref<11x128x128xbf16, #tpu.memory_space<vmem>>, vector<1x128x128xbf16>
    %63 = vector.shape_cast %62 : vector<1x128x128xbf16> to vector<128x128xbf16>
    %cst_39 = arith.constant dense<0.000000e+00> : vector<208x128xf32>
    %64 = tpu.matmul %61, %63, %cst_39 {dimension_numbers = #tpu.dot_dimension_numbers<[1], [0], [0], [1], [0, 0, 1, 1], [], []>} : vector<208x128xbf16>, vector<128x128xbf16>, vector<208x128xf32> -> vector<208x128xf32>
    %cst_40 = arith.constant 0.000000e+00 : f32
    %65 = vector.broadcast %cst_40 : f32 to vector<208x128xf32>
    %66 = arith.maximumf %64, %65 : vector<208x128xf32>
    %67 = arith.truncf %66 : vector<208x128xf32> to vector<208x128xbf16>
    %c10 = arith.constant 10 : index
    %c0_41 = arith.constant 0 : index
    %c0_42 = arith.constant 0 : index
    %68 = vector.load %arg2[%c10, %c0_41, %c0_42] : memref<11x128x128xbf16, #tpu.memory_space<vmem>>, vector<1x128x128xbf16>
    %69 = vector.shape_cast %68 : vector<1x128x128xbf16> to vector<128x128xbf16>
    %cst_43 = arith.constant dense<0.000000e+00> : vector<208x128xf32>
    %70 = tpu.matmul %67, %69, %cst_43 {dimension_numbers = #tpu.dot_dimension_numbers<[1], [0], [0], [1], [0, 0, 1, 1], [], []>} : vector<208x128xbf16>, vector<128x128xbf16>, vector<208x128xf32> -> vector<208x128xf32>
    %71 = arith.truncf %70 : vector<208x128xf32> to vector<208x128xbf16>
    %c0_44 = arith.constant 0 : index
    %c0_45 = arith.constant 0 : index
    %72 = vector.load %arg3[%c0_44, %c0_45] : memref<208x128xbf16, #tpu.memory_space<vmem>>, vector<208x128xbf16>
    tpu.vector_store %arg3[%c0_44, %c0_45], %71 {strides = array<i32>} : memref<208x128xbf16, #tpu.memory_space<vmem>>, vector<208x128xbf16>,
    return
  }
  func.func @transform_0(%arg0: i32) -> (i32, i32) {
    %c0_i32 = arith.constant 0 : i32
    %c0_i32_0 = arith.constant 0 : i32
    return %arg0, %c0_i32 : i32, i32
  }
  func.func @transform_1(%arg0: i32) -> (i32, i32, i32) {
    %c0_i32 = arith.constant 0 : i32
    %c0_i32_0 = arith.constant 0 : i32
    %c0_i32_1 = arith.constant 0 : i32
    %c0_i32_2 = arith.constant 0 : i32
    return %c0_i32, %c0_i32_0, %c0_i32_1 : i32, i32, i32
  }
  func.func @transform_2(%arg0: i32) -> (i32, i32) {
    %c0_i32 = arith.constant 0 : i32
    %c0_i32_0 = arith.constant 0 : i32
    return %arg0, %c0_i32 : i32, i32
  }
}

</mosaic_0001>

<llo_original>
// kernel: _ae_forward.1
$region0: #{_ae_forward.1}
  #allocation0 [shape = 'u32[]', space=smem, size = 0x4, offset = 0x4, fixed_abs, tag = 'smem constant byte address 0x4 - core index']
  #allocation1 [shape = 'u32[144,128]{1,0:T(1,128)}', space=vmem, size = 0x12000, scoped, tag = 'internal scratch']
  %s0 = inlined_call_operand.vmem [shape: bf16[208,32], index: 0, kind: input, shape index: {}]
  %s1 = inlined_call_operand.hbm [shape: bf16[11,128,128], index: 1, kind: input, shape index: {}]
  %s2 = inlined_call_operand.vmem [shape: bf16[208,128], index: 2, kind: output, shape index: {}]
  %s3 = sld [smem:[#allocation0]]
  $region22: #{_ae_forward.1} parent=0
    _
  %s5 = ssub.s32 1, %s3
  %s6 = scalar_select 0, %s5, %s3
  $region1: #{_ae_forward.1} parent=0
    #allocation2 [shape = 'u8[360448]{0}', space=vmem, size = 0x58000, scoped, tag = 'input window, operand 1, single buffered']
    #allocation3 [shape = 's32[1]{0}', space=sflag, size = 0x4, scoped, tag = 'scoped memory for _ae_forward.1']
    %7 = vsyncpa [#allocation3], 0
    // Predicated region
    $region2: #{_ae_forward.1} parent=1 // pred_check
      _
    $region3: #{_ae_forward.1} parent=1 // pred_check_branch
      %9 = sbr.rel (0) target = $region5
    $region4: #{_ae_forward.1} parent=1 // pred_region
      _
    $region5: #{_ae_forward.1} parent=1 // pred_fallthru
      _
    // Predicated region
    $region6: #{_ae_forward.1} parent=1 // pred_check
      _
    $region7: #{_ae_forward.1} parent=1 // pred_check_branch
      %11 = sbr.rel (0) target = $region9
    $region8: #{_ae_forward.1} parent=1 // pred_region
      %s13 = ssub.s32 11264, 11264
      %14 = vsyncadd [#allocation3], %s13
      %s15 = sshll.u32 [#allocation2], 4
      %s16 = int_to_ptr.vmem [resolvable:$true] %s15
      %21 = dma.hbm_to_vmem [thread:$0]  %s1, 11264, %s16, [#allocation3], 64, 64, 4
    $region9: #{_ae_forward.1} parent=1 // pred_fallthru
      _
    // Predicated region
    $region10: #{_ae_forward.1} parent=1 // pred_check
      _
    $region11: #{_ae_forward.1} parent=1 // pred_check_branch
      %23 = sbr.rel (0) target = $region13
    $region12: #{_ae_forward.1} parent=1 // pred_region
      %24 = dma.done [#allocation3], 11264
    $region13: #{_ae_forward.1} parent=1 // pred_fallthru
      _
    %v26 = vld [vmem:[%s0] sm:$0xf]
    %v27 = vld [vmem:[%s0 + $0x4] sm:$0xf]
    %v28 = vld [vmem:[%s0 + $0x8] sm:$0xf]
    %v29 = vld [vmem:[%s0 + $0xc] sm:$0xf]
    %v30 = vld [vmem:[%s0 + $0x10] sm:$0xf]
    %v31 = vld [vmem:[%s0 + $0x14] sm:$0xf]
    %v32 = vld [vmem:[%s0 + $0x18] sm:$0xf]
    %v33 = vld [vmem:[%s0 + $0x1c] sm:$0xf]
    %v34 = vld [vmem:[%s0 + $0x20] sm:$0xf]
    %v35 = vld [vmem:[%s0 + $0x24] sm:$0xf]
    %v36 = vld [vmem:[%s0 + $0x28] sm:$0xf]
    %v37 = vld [vmem:[%s0 + $0x2c] sm:$0xf]
    %v38 = vld [vmem:[%s0 + $0x30] sm:$0xf]
    %v39 = vld [vmem:[%s0 + $0x34] sm:$0xf]
    %v40 = vld [vmem:[%s0 + $0x38] sm:$0xf]
    %v41 = vld [vmem:[%s0 + $0x3c] sm:$0xf]
    %v42 = vld [vmem:[%s0 + $0x40] sm:$0xf]
    %v43 = vld [vmem:[%s0 + $0x44] sm:$0xf]
    %v44 = vld [vmem:[%s0 + $0x48] sm:$0xf]
    %v45 = vld [vmem:[%s0 + $0x4c] sm:$0xf]
    %v46 = vld [vmem:[%s0 + $0x50] sm:$0xf]
    %v47 = vld [vmem:[%s0 + $0x54] sm:$0xf]
    %v48 = vld [vmem:[%s0 + $0x58] sm:$0xf]
    %v49 = vld [vmem:[%s0 + $0x5c] sm:$0xf]
    %v50 = vld [vmem:[%s0 + $0x60] sm:$0xf]
    %v51 = vld [vmem:[%s0 + $0x64] sm:$0xf]
    %v52 = vlaneseq
    %v53 = vand.u32 %v52, 127
    %vm54 = vcmp.eq.s32.totalorder %v53, 95
    %v55 = vsel %vm54, 1, 0
    %v56 = vcvt.s32.f32 %v55
    %v57 = vpack.c.bf16 %v56, %v56
    %v84 = vunpack.c.l.b16 %v26
    %v85 = vunpack.c.l.b16 %v27
    %v86 = vunpack.c.l.b16 %v28
    %v87 = vunpack.c.l.b16 %v29
    %v88 = vunpack.c.l.b16 %v30
    %v89 = vunpack.c.l.b16 %v31
    %v90 = vunpack.c.l.b16 %v32
    %v91 = vunpack.c.l.b16 %v33
    %v92 = vunpack.c.l.b16 %v34
    %v93 = vunpack.c.l.b16 %v35
    %v94 = vunpack.c.l.b16 %v36
    %v95 = vunpack.c.l.b16 %v37
    %v96 = vunpack.c.l.b16 %v38
    %v97 = vunpack.c.l.b16 %v39
    %v98 = vunpack.c.l.b16 %v40
    %v99 = vunpack.c.l.b16 %v41
    %v100 = vunpack.c.l.b16 %v42
    %v101 = vunpack.c.l.b16 %v43
    %v102 = vunpack.c.l.b16 %v44
    %v103 = vunpack.c.l.b16 %v45
    %v104 = vunpack.c.l.b16 %v46
    %v105 = vunpack.c.l.b16 %v47
    %v106 = vunpack.c.l.b16 %v48
    %v107 = vunpack.c.l.b16 %v49
    %v108 = vunpack.c.l.b16 %v50
    %v109 = vunpack.c.l.b16 %v51
    %v110 = vpack.c.b16 %v85, %v84
    %v111 = vpack.c.b16 %v87, %v86
    %v112 = vpack.c.b16 %v89, %v88
    %v113 = vpack.c.b16 %v91, %v90
    %v114 = vpack.c.b16 %v93, %v92
    %v115 = vpack.c.b16 %v95, %v94
    %v116 = vpack.c.b16 %v97, %v96
    %v117 = vpack.c.b16 %v99, %v98
    %v118 = vpack.c.b16 %v101, %v100
    %v119 = vpack.c.b16 %v103, %v102
    %v120 = vpack.c.b16 %v105, %v104
    %v121 = vpack.c.b16 %v107, %v106
    %v122 = vpack.c.b16 %v109, %v108
    %124 = vrot.lane.b32.xlu0 %v57, 32
    %v125 = vpop.permute.xlu0 %124
    %vm126 = vcmask 261120
    %v129 = vsel %vm126, %v110, %v125
    %v132 = vsel %vm126, %v111, %v125
    %v135 = vsel %vm126, %v112, %v125
    %v138 = vsel %vm126, %v113, %v125
    %v141 = vsel %vm126, %v114, %v125
    %v144 = vsel %vm126, %v115, %v125
    %v147 = vsel %vm126, %v116, %v125
    %v150 = vsel %vm126, %v117, %v125
    %v153 = vsel %vm126, %v118, %v125
    %v156 = vsel %vm126, %v119, %v125
    %v159 = vsel %vm126, %v120, %v125
    %v162 = vsel %vm126, %v121, %v125
    %v165 = vsel %vm126, %v122, %v125
    %v167 = vld [vmem:[#allocation2] sm:$0xf]
    %v168 = vld [vmem:[#allocation2 + $0x4] sm:$0xf]
    %v169 = vld [vmem:[#allocation2 + $0x8] sm:$0xf]
    %v170 = vld [vmem:[#allocation2 + $0xc] sm:$0xf]
    %v171 = vld [vmem:[#allocation2 + $0x10] sm:$0xf]
    %v172 = vld [vmem:[#allocation2 + $0x14] sm:$0xf]
    %v173 = vld [vmem:[#allocation2 + $0x18] sm:$0xf]
    %v174 = vld [vmem:[#allocation2 + $0x1c] sm:$0xf]
    %v175 = vld [vmem:[#allocation2 + $0x20] sm:$0xf]
    %v176 = vld [vmem:[#allocation2 + $0x24] sm:$0xf]
    %v177 = vld [vmem:[#allocation2 + $0x28] sm:$0xf]
    %v178 = vld [vmem:[#allocation2 + $0x2c] sm:$0xf]
    %v179 = vld [vmem:[#allocation2 + $0x30] sm:$0xf]
    %v180 = vld [vmem:[#allocation2 + $0x34] sm:$0xf]
    %v181 = vld [vmem:[#allocation2 + $0x38] sm:$0xf]
    %v182 = vld [vmem:[#allocation2 + $0x3c] sm:$0xf]
    %v199 = vunpack.c.l.b16 %v167
    %v200 = vunpack.c.l.b16 %v168
    %v201 = vunpack.c.l.b16 %v169
    %v202 = vunpack.c.l.b16 %v170
    %v203 = vunpack.c.l.b16 %v171
    %v204 = vunpack.c.l.b16 %v172
    %v205 = vunpack.c.l.b16 %v173
    %v206 = vunpack.c.l.b16 %v174
    %v207 = vunpack.c.l.b16 %v175
    %v208 = vunpack.c.l.b16 %v176
    %v209 = vunpack.c.l.b16 %v177
    %v210 = vunpack.c.l.b16 %v178
    %v211 = vunpack.c.l.b16 %v179
    %v212 = vunpack.c.l.b16 %v180
    %v213 = vunpack.c.l.b16 %v181
    %v214 = vunpack.c.l.b16 %v182
    %v215 = vpack.c.b16 %v200, %v199
    %v216 = vpack.c.b16 %v202, %v201
    %v217 = vpack.c.b16 %v204, %v203
    %v218 = vpack.c.b16 %v206, %v205
    %v219 = vpack.c.b16 %v208, %v207
    %v220 = vpack.c.b16 %v210, %v209
    %v221 = vpack.c.b16 %v212, %v211
    %v222 = vpack.c.b16 %v214, %v213
    %231 = vmatprep.subr.bf16.mxu0 0
    %232 = vmatpush1.bf16.msra.mxu0 %v215
    %233 = vmatprep.subr.bf16.mxu0 0
    %234 = vmatpush1.bf16.msra.mxu0 %v216
    %235 = vmatprep.subr.bf16.mxu0 0
    %236 = vmatpush1.bf16.msra.mxu0 %v217
    %237 = vmatprep.subr.bf16.mxu0 0
    %238 = vmatpush1.bf16.msra.mxu0 %v218
    %239 = vmatprep.subr.bf16.mxu0 0
    %240 = vmatpush1.bf16.msra.mxu0 %v219
    %241 = vmatprep.subr.bf16.mxu0 0
    %242 = vmatpush1.bf16.msra.mxu0 %v220
    %243 = vmatprep.subr.bf16.mxu0 0
    %244 = vmatpush1.bf16.msra.mxu0 %v221
    %245 = vmatprep.subr.bf16.mxu0 0
    %246 = vmatpush1.bf16.msra.mxu0 %v222
    %247 = vmatprep.subr.bf16.mxu0 0
    %248 = vmatpush1.bf16.msra.mxu0 0
    %249 = vmatprep.subr.bf16.mxu0 0
    %250 = vmatpush1.bf16.msra.mxu0 0
    %251 = vmatprep.subr.bf16.mxu0 0
    %252 = vmatpush1.bf16.msra.mxu0 0
    %253 = vmatprep.subr.bf16.mxu0 0
    %254 = vmatpush1.bf16.msra.mxu0 0
    %255 = vmatprep.subr.bf16.mxu0 0
    %256 = vmatpush1.bf16.msra.mxu0 0
    %257 = vmatprep.subr.bf16.mxu0 0
    %258 = vmatpush1.bf16.msra.mxu0 0
    %259 = vmatprep.subr.bf16.mxu0 0
    %260 = vmatpush1.bf16.msra.mxu0 0
    %261 = vmatprep.subr.bf16.mxu0 0
    %262 = vmatpush1.bf16.msra.mxu0 0
    %263 = vmatprep.mubr.bf16.mxu0 0
    %264 = vmatmul.mubr.bf16.gmra.mrb[0].mxu0 %v129
    %v265 = vpop.f32.mrb[0].mxu0
    %v266 = vadd.f32 0.0, %v265
    %v267 = vpop.f32.mrb[0].mxu0
    %v268 = vpop.f32.mrb[0].mxu0
    %v269 = vadd.f32 0.0, %v268
    %v270 = vpop.f32.mrb[0].mxu0
    %271 = vmatprep.mubr.bf16.mxu0 0
    %272 = vmatmul.mubr.bf16.gmra.mrb[0].mxu0 %v132
    %v273 = vpop.f32.mrb[0].mxu0
    %v274 = vadd.f32 0.0, %v273
    %v275 = vpop.f32.mrb[0].mxu0
    %v276 = vpop.f32.mrb[0].mxu0
    %v277 = vadd.f32 0.0, %v276
    %v278 = vpop.f32.mrb[0].mxu0
    %279 = vmatprep.mubr.bf16.mxu0 0
    %280 = vmatmul.mubr.bf16.gmra.mrb[0].mxu0 %v135
    %v281 = vpop.f32.mrb[0].mxu0
    %v282 = vadd.f32 0.0, %v281
    %v283 = vpop.f32.mrb[0].mxu0
    %v284 = vpop.f32.mrb[0].mxu0
    %v285 = vadd.f32 0.0, %v284
    %v286 = vpop.f32.mrb[0].mxu0
    %287 = vmatprep.mubr.bf16.mxu0 0
    %288 = vmatmul.mubr.bf16.gmra.mrb[0].mxu0 %v138
    %v289 = vpop.f32.mrb[0].mxu0
    %v290 = vadd.f32 0.0, %v289
    %v291 = vpop.f32.mrb[0].mxu0
    %v292 = vpop.f32.mrb[0].mxu0
    %v293 = vadd.f32 0.0, %v292
    %v294 = vpop.f32.mrb[0].mxu0
    %295 = vmatprep.mubr.bf16.mxu0 0
    %296 = vmatmul.mubr.bf16.gmra.mrb[0].mxu0 %v141
    %v297 = vpop.f32.mrb[0].mxu0
    %v298 = vadd.f32 0.0, %v297
    %v299 = vpop.f32.mrb[0].mxu0
    %v300 = vpop.f32.mrb[0].mxu0
    %v301 = vadd.f32 0.0, %v300
    %v302 = vpop.f32.mrb[0].mxu0
    %303 = vmatprep.mubr.bf16.mxu0 0
    %304 = vmatmul.mubr.bf16.gmra.mrb[0].mxu0 %v144
    %v305 = vpop.f32.mrb[0].mxu0
    %v306 = vadd.f32 0.0, %v305
    %v307 = vpop.f32.mrb[0].mxu0
    %v308 = vpop.f32.mrb[0].mxu0
    %v309 = vadd.f32 0.0, %v308
    %v310 = vpop.f32.mrb[0].mxu0
    %311 = vmatprep.mubr.bf16.mxu0 0
    %312 = vmatmul.mubr.bf16.gmra.mrb[0].mxu0 %v147
    %v313 = vpop.f32.mrb[0].mxu0
    %v314 = vadd.f32 0.0, %v313
    %v315 = vpop.f32.mrb[0].mxu0
    %v316 = vpop.f32.mrb[0].mxu0
    %v317 = vadd.f32 0.0, %v316
    %v318 = vpop.f32.mrb[0].mxu0
    %319 = vmatprep.mubr.bf16.mxu0 0
    %320 = vmatmul.mubr.bf16.gmra.mrb[0].mxu0 %v150
    %v321 = vpop.f32.mrb[0].mxu0
    %v322 = vadd.f32 0.0, %v321
    %v323 = vpop.f32.mrb[0].mxu0
    %v324 = vpop.f32.mrb[0].mxu0
    %v325 = vadd.f32 0.0, %v324
    %v326 = vpop.f32.mrb[0].mxu0
    %327 = vmatprep.mubr.bf16.mxu0 0
    %328 = vmatmul.mubr.bf16.gmra.mrb[0].mxu0 %v153
    %v329 = vpop.f32.mrb[0].mxu0
    %v330 = vadd.f32 0.0, %v329
    %v331 = vpop.f32.mrb[0].mxu0
    %v332 = vpop.f32.mrb[0].mxu0
    %v333 = vadd.f32 0.0, %v332
    %v334 = vpop.f32.mrb[0].mxu0
    %335 = vmatprep.mubr.bf16.mxu0 0
    %336 = vmatmul.mubr.bf16.gmra.mrb[0].mxu0 %v156
    %v337 = vpop.f32.mrb[0].mxu0
    %v338 = vadd.f32 0.0, %v337
    %v339 = vpop.f32.mrb[0].mxu0
    %v340 = vpop.f32.mrb[0].mxu0
    %v341 = vadd.f32 0.0, %v340
    %v342 = vpop.f32.mrb[0].mxu0
    %343 = vmatprep.mubr.bf16.mxu0 0
    %344 = vmatmul.mubr.bf16.gmra.mrb[0].mxu0 %v159
    %v345 = vpop.f32.mrb[0].mxu0
    %v346 = vadd.f32 0.0, %v345
    %v347 = vpop.f32.mrb[0].mxu0
    %v348 = vpop.f32.mrb[0].mxu0
    %v349 = vadd.f32 0.0, %v348
    %v350 = vpop.f32.mrb[0].mxu0
    %351 = vmatprep.mubr.bf16.mxu0 0
    %352 = vmatmul.mubr.bf16.gmra.mrb[0].mxu0 %v162
    %v353 = vpop.f32.mrb[0].mxu0
    %v354 = vadd.f32 0.0, %v353
    %v355 = vpop.f32.mrb[0].mxu0
    %v356 = vpop.f32.mrb[0].mxu0
    %v357 = vadd.f32 0.0, %v356
    %v358 = vpop.f32.mrb[0].mxu0
    %359 = vmatprep.mubr.bf16.mxu0 0
    %360 = vmatmul.mubr.bf16.gmra.mrb[0].mxu0 %v165
    %v361 = vpop.f32.mrb[0].mxu0
    %v362 = vadd.f32 0.0, %v361
    %v363 = vpop.f32.mrb[0].mxu0
    %v364 = vpop.f32.mrb[0].mxu0
    %v365 = vadd.f32 0.0, %v364
    %v366 = vpop.f32.mrb[0].mxu0
    %367 = vdwg.mxu0
    %v368 = vmax.f32 %v266, 0.0
    %v369 = vmax.f32 %v269, 0.0
    %v370 = vmax.f32 %v274, 0.0
    %v371 = vmax.f32 %v277, 0.0
    %v372 = vmax.f32 %v282, 0.0
    %v373 = vmax.f32 %v285, 0.0
    %v374 = vmax.f32 %v290, 0.0
    %v375 = vmax.f32 %v293, 0.0
    %v376 = vmax.f32 %v298, 0.0
    %v377 = vmax.f32 %v301, 0.0
    %v378 = vmax.f32 %v306, 0.0
    %v379 = vmax.f32 %v309, 0.0
    %v380 = vmax.f32 %v314, 0.0
    %v381 = vmax.f32 %v317, 0.0
    %v382 = vmax.f32 %v322, 0.0
    %v383 = vmax.f32 %v325, 0.0
    %v384 = vmax.f32 %v330, 0.0
    %v385 = vmax.f32 %v333, 0.0
    %v386 = vmax.f32 %v338, 0.0
    %v387 = vmax.f32 %v341, 0.0
    %v388 = vmax.f32 %v346, 0.0
    %v389 = vmax.f32 %v349, 0.0
    %v390 = vmax.f32 %v354, 0.0
    %v391 = vmax.f32 %v357, 0.0
    %v392 = vmax.f32 %v362, 0.0
    %v393 = vmax.f32 %v365, 0.0
    %v394 = vpack.c.bf16 %v369, %v368
    %v395 = vpack.c.bf16 %v371, %v370
    %v396 = vpack.c.bf16 %v373, %v372
    %v397 = vpack.c.bf16 %v375, %v374
    %v398 = vpack.c.bf16 %v377, %v376
    %v399 = vpack.c.bf16 %v379, %v378
    %v400 = vpack.c.bf16 %v381, %v380
    %v401 = vpack.c.bf16 %v383, %v382
    %v402 = vpack.c.bf16 %v385, %v384
    %v403 = vpack.c.bf16 %v387, %v386
    %v404 = vpack.c.bf16 %v389, %v388
    %v405 = vpack.c.bf16 %v391, %v390
    %v406 = vpack.c.bf16 %v393, %v392
    %s407 = scalar_lea.vmem [#allocation2], 64
    %v408 = vld [vmem:[%s407] sm:$0xf]
    %v409 = vld [vmem:[%s407 + $0x4] sm:$0xf]
    %v410 = vld [vmem:[%s407 + $0x8] sm:$0xf]
    %v411 = vld [vmem:[%s407 + $0xc] sm:$0xf]
    %v412 = vld [vmem:[%s407 + $0x10] sm:$0xf]
    %v413 = vld [vmem:[%s407 + $0x14] sm:$0xf]
    %v414 = vld [vmem:[%s407 + $0x18] sm:$0xf]
    %v415 = vld [vmem:[%s407 + $0x1c] sm:$0xf]
    %v416 = vld [vmem:[%s407 + $0x20] sm:$0xf]
    %v417 = vld [vmem:[%s407 + $0x24] sm:$0xf]
    %v418 = vld [vmem:[%s407 + $0x28] sm:$0xf]
    %v419 = vld [vmem:[%s407 + $0x2c] sm:$0xf]
    %v420 = vld [vmem:[%s407 + $0x30] sm:$0xf]
    %v421 = vld [vmem:[%s407 + $0x34] sm:$0xf]
    %v422 = vld [vmem:[%s407 + $0x38] sm:$0xf]
    %v423 = vld [vmem:[%s407 + $0x3c] sm:$0xf]
    %v440 = vunpack.c.l.b16 %v408
    %v441 = vunpack.c.l.b16 %v409
    %v442 = vunpack.c.l.b16 %v410
    %v443 = vunpack.c.l.b16 %v411
    %v444 = vunpack.c.l.b16 %v412
    %v445 = vunpack.c.l.b16 %v413
    %v446 = vunpack.c.l.b16 %v414
    %v447 = vunpack.c.l.b16 %v415
    %v448 = vunpack.c.l.b16 %v416
    %v449 = vunpack.c.l.b16 %v417
    %v450 = vunpack.c.l.b16 %v418
    %v451 = vunpack.c.l.b16 %v419
    %v452 = vunpack.c.l.b16 %v420
    %v453 = vunpack.c.l.b16 %v421
    %v454 = vunpack.c.l.b16 %v422
    %v455 = vunpack.c.l.b16 %v423
    %v456 = vpack.c.b16 %v441, %v440
    %v457 = vpack.c.b16 %v443, %v442
    %v458 = vpack.c.b16 %v445, %v444
    %v459 = vpack.c.b16 %v447, %v446
    %v460 = vpack.c.b16 %v449, %v448
    %v461 = vpack.c.b16 %v451, %v450
    %v462 = vpack.c.b16 %v453, %v452
    %v463 = vpack.c.b16 %v455, %v454
    %472 = vmatprep.subr.bf16.mxu0 0
    %473 = vmatpush1.bf16.msra.mxu0 %v456
    %474 = vmatprep.subr.bf16.mxu0 0
    %475 = vmatpush1.bf16.msra.mxu0 %v457
    %476 = vmatprep.subr.bf16.mxu0 0
    %477 = vmatpush1.bf16.msra.mxu0 %v458
    %478 = vmatprep.subr.bf16.mxu0 0
    %479 = vmatpush1.bf16.msra.mxu0 %v459
    %480 = vmatprep.subr.bf16.mxu0 0
    %481 = vmatpush1.bf16.msra.mxu0 %v460
    %482 = vmatprep.subr.bf16.mxu0 0
    %483 = vmatpush1.bf16.msra.mxu0 %v461
    %484 = vmatprep.subr.bf16.mxu0 0
    %485 = vmatpush1.bf16.msra.mxu0 %v462
    %486 = vmatprep.subr.bf16.mxu0 0
    %487 = vmatpush1.bf16.msra.mxu0 %v463
    %488 = vmatprep.subr.bf16.mxu0 0
    %489 = vmatpush1.bf16.msra.mxu0 0
    %490 = vmatprep.subr.bf16.mxu0 0
    %491 = vmatpush1.bf16.msra.mxu0 0
    %492 = vmatprep.subr.bf16.mxu0 0
    %493 = vmatpush1.bf16.msra.mxu0 0
    %494 = vmatprep.subr.bf16.mxu0 0
    %495 = vmatpush1.bf16.msra.mxu0 0
    %496 = vmatprep.subr.bf16.mxu0 0
    %497 = vmatpush1.bf16.msra.mxu0 0
    %498 = vmatprep.subr.bf16.mxu0 0
    %499 = vmatpush1.bf16.msra.mxu0 0
    %500 = vmatprep.subr.bf16.mxu0 0
    %501 = vmatpush1.bf16.msra.mxu0 0
    %502 = vmatprep.subr.bf16.mxu0 0
    %503 = vmatpush1.bf16.msra.mxu0 0
    %504 = vmatprep.mubr.bf16.mxu0 0
    %505 = vmatmul.mubr.bf16.gmra.mrb[0].mxu0 %v394
    %v506 = vpop.f32.mrb[0].mxu0
    %v507 = vadd.f32 0.0, %v506
    %v508 = vpop.f32.mrb[0].mxu0
    %v509 = vpop.f32.mrb[0].mxu0
    %v510 = vadd.f32 0.0, %v509
    %v511 = vpop.f32.mrb[0].mxu0
    %512 = vmatprep.mubr.bf16.mxu0 0
    %513 = vmatmul.mubr.bf16.gmra.mrb[0].mxu0 %v395
    %v514 = vpop.f32.mrb[0].mxu0
    %v515 = vadd.f32 0.0, %v514
    %v516 = vpop.f32.mrb[0].mxu0
    %v517 = vpop.f32.mrb[0].mxu0
    %v518 = vadd.f32 0.0, %v517
    %v519 = vpop.f32.mrb[0].mxu0
    %520 = vmatprep.mubr.bf16.mxu0 0
    %521 = vmatmul.mubr.bf16.gmra.mrb[0].mxu0 %v396
    %v522 = vpop.f32.mrb[0].mxu0
    %v523 = vadd.f32 0.0, %v522
    %v524 = vpop.f32.mrb[0].mxu0
    %v525 = vpop.f32.mrb[0].mxu0
    %v526 = vadd.f32 0.0, %v525
    %v527 = vpop.f32.mrb[0].mxu0
    %528 = vmatprep.mubr.bf16.mxu0 0
    %529 = vmatmul.mubr.bf16.gmra.mrb[0].mxu0 %v397
    %v530 = vpop.f32.mrb[0].mxu0
    %v531 = vadd.f32 0.0, %v530
    %v532 = vpop.f32.mrb[0].mxu0
    %v533 = vpop.f32.mrb[0].mxu0
    %v534 = vadd.f32 0.0, %v533
    %v535 = vpop.f32.mrb[0].mxu0
    %536 = vmatprep.mubr.bf16.mxu0 0
    %537 = vmatmul.mubr.bf16.gmra.mrb[0].mxu0 %v398
    %v538 = vpop.f32.mrb[0].mxu0
    %v539 = vadd.f32 0.0, %v538
    %v540 = vpop.f32.mrb[0].mxu0
    %v541 = vpop.f32.mrb[0].mxu0
    %v542 = vadd.f32 0.0, %v541
    %v543 = vpop.f32.mrb[0].mxu0
    %544 = vmatprep.mubr.bf16.mxu0 0
    %545 = vmatmul.mubr.bf16.gmra.mrb[0].mxu0 %v399
    %v546 = vpop.f32.mrb[0].mxu0
    %v547 = vadd.f32 0.0, %v546
    %v548 = vpop.f32.mrb[0].mxu0
    %v549 = vpop.f32.mrb[0].mxu0
    %v550 = vadd.f32 0.0, %v549
    %v551 = vpop.f32.mrb[0].mxu0
    %552 = vmatprep.mubr.bf16.mxu0 0
    %553 = vmatmul.mubr.bf16.gmra.mrb[0].mxu0 %v400
    %v554 = vpop.f32.mrb[0].mxu0
    %v555 = vadd.f32 0.0, %v554
    %v556 = vpop.f32.mrb[0].mxu0
    %v557 = vpop.f32.mrb[0].mxu0
    %v558 = vadd.f32 0.0, %v557
    %v559 = vpop.f32.mrb[0].mxu0
    %560 = vmatprep.mubr.bf16.mxu0 0
    %561 = vmatmul.mubr.bf16.gmra.mrb[0].mxu0 %v401
    %v562 = vpop.f32.mrb[0].mxu0
    %v563 = vadd.f32 0.0, %v562
    %v564 = vpop.f32.mrb[0].mxu0
    %v565 = vpop.f32.mrb[0].mxu0
    %v566 = vadd.f32 0.0, %v565
    %v567 = vpop.f32.mrb[0].mxu0
    %568 = vmatprep.mubr.bf16.mxu0 0
    %569 = vmatmul.mubr.bf16.gmra.mrb[0].mxu0 %v402
    %v570 = vpop.f32.mrb[0].mxu0
    %v571 = vadd.f32 0.0, %v570
    %v572 = vpop.f32.mrb[0].mxu0
    %v573 = vpop.f32.mrb[0].mxu0
    %v574 = vadd.f32 0.0, %v573
    %v575 = vpop.f32.mrb[0].mxu0
    %576 = vmatprep.mubr.bf16.mxu0 0
    %577 = vmatmul.mubr.bf16.gmra.mrb[0].mxu0 %v403
    %v578 = vpop.f32.mrb[0].mxu0
    %v579 = vadd.f32 0.0, %v578
    %v580 = vpop.f32.mrb[0].mxu0
    %v581 = vpop.f32.mrb[0].mxu0
    %v582 = vadd.f32 0.0, %v581
    %v583 = vpop.f32.mrb[0].mxu0
    %584 = vmatprep.mubr.bf16.mxu0 0
    %585 = vmatmul.mubr.bf16.gmra.mrb[0].mxu0 %v404
    %v586 = vpop.f32.mrb[0].mxu0
    %v587 = vadd.f32 0.0, %v586
    %v588 = vpop.f32.mrb[0].mxu0
    %v589 = vpop.f32.mrb[0].mxu0
    %v590 = vadd.f32 0.0, %v589
    %v591 = vpop.f32.mrb[0].mxu0
    %592 = vmatprep.mubr.bf16.mxu0 0
    %593 = vmatmul.mubr.bf16.gmra.mrb[0].mxu0 %v405
    %v594 = vpop.f32.mrb[0].mxu0
    %v595 = vadd.f32 0.0, %v594
    %v596 = vpop.f32.mrb[0].mxu0
    %v597 = vpop.f32.mrb[0].mxu0
    %v598 = vadd.f32 0.0, %v597
    %v599 = vpop.f32.mrb[0].mxu0
    %600 = vmatprep.mubr.bf16.mxu0 0
    %601 = vmatmul.mubr.bf16.gmra.mrb[0].mxu0 %v406
    %v602 = vpop.f32.mrb[0].mxu0
    %v603 = vadd.f32 0.0, %v602
    %v604 = vpop.f32.mrb[0].mxu0
    %v605 = vpop.f32.mrb[0].mxu0
    %v606 = vadd.f32 0.0, %v605
    %v607 = vpop.f32.mrb[0].mxu0
    %608 = vdwg.mxu0
    %v609 = vmax.f32 %v507, 0.0
    %v610 = vmax.f32 %v510, 0.0
    %v611 = vmax.f32 %v515, 0.0
    %v612 = vmax.f32 %v518, 0.0
    %v613 = vmax.f32 %v523, 0.0
    %v614 = vmax.f32 %v526, 0.0
    %v615 = vmax.f32 %v531, 0.0
    %v616 = vmax.f32 %v534, 0.0
    %v617 = vmax.f32 %v539, 0.0
    %v618 = vmax.f32 %v542, 0.0
    %v619 = vmax.f32 %v547, 0.0
    %v620 = vmax.f32 %v550, 0.0
    %v621 = vmax.f32 %v555, 0.0
    %v622 = vmax.f32 %v558, 0.0
    %v623 = vmax.f32 %v563, 0.0
    %v624 = vmax.f32 %v566, 0.0
    %v625 = vmax.f32 %v571, 0.0
    %v626 = vmax.f32 %v574, 0.0
    %v627 = vmax.f32 %v579, 0.0
    %v628 = vmax.f32 %v582, 0.0
    %v629 = vmax.f32 %v587, 0.0
    %v630 = vmax.f32 %v590, 0.0
    %v631 = vmax.f32 %v595, 0.0
    %v632 = vmax.f32 %v598, 0.0
    %v633 = vmax.f32 %v603, 0.0
    %v634 = vmax.f32 %v606, 0.0
    %v635 = vpack.c.bf16 %v610, %v609
    %v636 = vpack.c.bf16 %v612, %v611
    %v637 = vpack.c.bf16 %v614, %v613
    %v638 = vpack.c.bf16 %v616, %v615
    %v639 = vpack.c.bf16 %v618, %v617
    %v640 = vpack.c.bf16 %v620, %v619
    %v641 = vpack.c.bf16 %v622, %v621
    %v642 = vpack.c.bf16 %v624, %v623
    %v643 = vpack.c.bf16 %v626, %v625
    %v644 = vpack.c.bf16 %v628, %v627
    %v645 = vpack.c.bf16 %v630, %v629
    %v646 = vpack.c.bf16 %v632, %v631
    %v647 = vpack.c.bf16 %v634, %v633
    %s648 = scalar_lea.vmem [#allocation2], 128
    %v649 = vld [vmem:[%s648] sm:$0xf]
    %v650 = vld [vmem:[%s648 + $0x4] sm:$0xf]
    %v651 = vld [vmem:[%s648 + $0x8] sm:$0xf]
    %v652 = vld [vmem:[%s648 + $0xc] sm:$0xf]
    %v653 = vld [vmem:[%s648 + $0x10] sm:$0xf]
    %v654 = vld [vmem:[%s648 + $0x14] sm:$0xf]
    %v655 = vld [vmem:[%s648 + $0x18] sm:$0xf]
    %v656 = vld [vmem:[%s648 + $0x1c] sm:$0xf]
    %v657 = vld [vmem:[%s648 + $0x20] sm:$0xf]
    %v658 = vld [vmem:[%s648 + $0x24] sm:$0xf]
    %v659 = vld [vmem:[%s648 + $0x28] sm:$0xf]
    %v660 = vld [vmem:[%s648 + $0x2c] sm:$0xf]
    %v661 = vld [vmem:[%s648 + $0x30] sm:$0xf]
    %v662 = vld [vmem:[%s648 + $0x34] sm:$0xf]
    %v663 = vld [vmem:[%s648 + $0x38] sm:$0xf]
    %v664 = vld [vmem:[%s648 + $0x3c] sm:$0xf]
    %v681 = vunpack.c.l.b16 %v649
    %v682 = vunpack.c.l.b16 %v650
    %v683 = vunpack.c.l.b16 %v651
    %v684 = vunpack.c.l.b16 %v652
    %v685 = vunpack.c.l.b16 %v653
    %v686 = vunpack.c.l.b16 %v654
    %v687 = vunpack.c.l.b16 %v655
    %v688 = vunpack.c.l.b16 %v656
    %v689 = vunpack.c.l.b16 %v657
    %v690 = vunpack.c.l.b16 %v658
    %v691 = vunpack.c.l.b16 %v659
    %v692 = vunpack.c.l.b16 %v660
    %v693 = vunpack.c.l.b16 %v661
    %v694 = vunpack.c.l.b16 %v662
    %v695 = vunpack.c.l.b16 %v663
    %v696 = vunpack.c.l.b16 %v664
    %v697 = vpack.c.b16 %v682, %v681
    %v698 = vpack.c.b16 %v684, %v683
    %v699 = vpack.c.b16 %v686, %v685
    %v700 = vpack.c.b16 %v688, %v687
    %v701 = vpack.c.b16 %v690, %v689
    %v702 = vpack.c.b16 %v692, %v691
    %v703 = vpack.c.b16 %v694, %v693
    %v704 = vpack.c.b16 %v696, %v695
    %713 = vmatprep.subr.bf16.mxu0 0
    %714 = vmatpush1.bf16.msra.mxu0 %v697
    %715 = vmatprep.subr.bf16.mxu0 0
    %716 = vmatpush1.bf16.msra.mxu0 %v698
    %717 = vmatprep.subr.bf16.mxu0 0
    %718 = vmatpush1.bf16.msra.mxu0 %v699
    %719 = vmatprep.subr.bf16.mxu0 0
    %720 = vmatpush1.bf16.msra.mxu0 %v700
    %721 = vmatprep.subr.bf16.mxu0 0
    %722 = vmatpush1.bf16.msra.mxu0 %v701
    %723 = vmatprep.subr.bf16.mxu0 0
    %724 = vmatpush1.bf16.msra.mxu0 %v702
    %725 = vmatprep.subr.bf16.mxu0 0
    %726 = vmatpush1.bf16.msra.mxu0 %v703
    %727 = vmatprep.subr.bf16.mxu0 0
    %728 = vmatpush1.bf16.msra.mxu0 %v704
    %729 = vmatprep.subr.bf16.mxu0 0
    %730 = vmatpush1.bf16.msra.mxu0 0
    %731 = vmatprep.subr.bf16.mxu0 0
    %732 = vmatpush1.bf16.msra.mxu0 0
    %733 = vmatprep.subr.bf16.mxu0 0
    %734 = vmatpush1.bf16.msra.mxu0 0
    %735 = vmatprep.subr.bf16.mxu0 0
    %736 = vmatpush1.bf16.msra.mxu0 0
    %737 = vmatprep.subr.bf16.mxu0 0
    %738 = vmatpush1.bf16.msra.mxu0 0
    %739 = vmatprep.subr.bf16.mxu0 0
    %740 = vmatpush1.bf16.msra.mxu0 0
    %741 = vmatprep.subr.bf16.mxu0 0
    %742 = vmatpush1.bf16.msra.mxu0 0
    %743 = vmatprep.subr.bf16.mxu0 0
    %744 = vmatpush1.bf16.msra.mxu0 0
    %745 = vmatprep.mubr.bf16.mxu0 0
    %746 = vmatmul.mubr.bf16.gmra.mrb[0].mxu0 %v635
    %v747 = vpop.f32.mrb[0].mxu0
    %v748 = vadd.f32 0.0, %v747
    %v749 = vpop.f32.mrb[0].mxu0
    %v750 = vpop.f32.mrb[0].mxu0
    %v751 = vadd.f32 0.0, %v750
    %v752 = vpop.f32.mrb[0].mxu0
    %753 = vmatprep.mubr.bf16.mxu0 0
    %754 = vmatmul.mubr.bf16.gmra.mrb[0].mxu0 %v636
    %v755 = vpop.f32.mrb[0].mxu0
    %v756 = vadd.f32 0.0, %v755
    %v757 = vpop.f32.mrb[0].mxu0
    %v758 = vpop.f32.mrb[0].mxu0
    %v759 = vadd.f32 0.0, %v758
    %v760 = vpop.f32.mrb[0].mxu0
    %761 = vmatprep.mubr.bf16.mxu0 0
    %762 = vmatmul.mubr.bf16.gmra.mrb[0].mxu0 %v637
    %v763 = vpop.f32.mrb[0].mxu0
    %v764 = vadd.f32 0.0, %v763
    %v765 = vpop.f32.mrb[0].mxu0
    %v766 = vpop.f32.mrb[0].mxu0
    %v767 = vadd.f32 0.0, %v766
    %v768 = vpop.f32.mrb[0].mxu0
    %769 = vmatprep.mubr.bf16.mxu0 0
    %770 = vmatmul.mubr.bf16.gmra.mrb[0].mxu0 %v638
    %v771 = vpop.f32.mrb[0].mxu0
    %v772 = vadd.f32 0.0, %v771
    %v773 = vpop.f32.mrb[0].mxu0
    %v774 = vpop.f32.mrb[0].mxu0
    %v775 = vadd.f32 0.0, %v774
    %v776 = vpop.f32.mrb[0].mxu0
    %777 = vmatprep.mubr.bf16.mxu0 0
    %778 = vmatmul.mubr.bf16.gmra.mrb[0].mxu0 %v639
    %v779 = vpop.f32.mrb[0].mxu0
    %v780 = vadd.f32 0.0, %v779
    %v781 = vpop.f32.mrb[0].mxu0
    %v782 = vpop.f32.mrb[0].mxu0
    %v783 = vadd.f32 0.0, %v782
    %v784 = vpop.f32.mrb[0].mxu0
    %785 = vmatprep.mubr.bf16.mxu0 0
    %786 = vmatmul.mubr.bf16.gmra.mrb[0].mxu0 %v640
    %v787 = vpop.f32.mrb[0].mxu0
    %v788 = vadd.f32 0.0, %v787
    %v789 = vpop.f32.mrb[0].mxu0
    %v790 = vpop.f32.mrb[0].mxu0
    %v791 = vadd.f32 0.0, %v790
    %v792 = vpop.f32.mrb[0].mxu0
    %793 = vmatprep.mubr.bf16.mxu0 0
    %794 = vmatmul.mubr.bf16.gmra.mrb[0].mxu0 %v641
    %v795 = vpop.f32.mrb[0].mxu0
    %v796 = vadd.f32 0.0, %v795
    %v797 = vpop.f32.mrb[0].mxu0
    %v798 = vpop.f32.mrb[0].mxu0
    %v799 = vadd.f32 0.0, %v798
    %v800 = vpop.f32.mrb[0].mxu0
    %801 = vmatprep.mubr.bf16.mxu0 0
    %802 = vmatmul.mubr.bf16.gmra.mrb[0].mxu0 %v642
    %v803 = vpop.f32.mrb[0].mxu0
    %v804 = vadd.f32 0.0, %v803
    %v805 = vpop.f32.mrb[0].mxu0
    %v806 = vpop.f32.mrb[0].mxu0
    %v807 = vadd.f32 0.0, %v806
    %v808 = vpop.f32.mrb[0].mxu0
    %809 = vmatprep.mubr.bf16.mxu0 0
    %810 = vmatmul.mubr.bf16.gmra.mrb[0].mxu0 %v643
    %v811 = vpop.f32.mrb[0].mxu0
    %v812 = vadd.f32 0.0, %v811
    %v813 = vpop.f32.mrb[0].mxu0
    %v814 = vpop.f32.mrb[0].mxu0
    %v815 = vadd.f32 0.0, %v814
    %v816 = vpop.f32.mrb[0].mxu0
    %817 = vmatprep.mubr.bf16.mxu0 0
    %818 = vmatmul.mubr.bf16.gmra.mrb[0].mxu0 %v644
    %v819 = vpop.f32.mrb[0].mxu0
    %v820 = vadd.f32 0.0, %v819
    %v821 = vpop.f32.mrb[0].mxu0
    %v822 = vpop.f32.mrb[0].mxu0
    %v823 = vadd.f32 0.0, %v822
    %v824 = vpop.f32.mrb[0].mxu0
    %825 = vmatprep.mubr.bf16.mxu0 0
    %826 = vmatmul.mubr.bf16.gmra.mrb[0].mxu0 %v645
    %v827 = vpop.f32.mrb[0].mxu0
    %v828 = vadd.f32 0.0, %v827
    %v829 = vpop.f32.mrb[0].mxu0
    %v830 = vpop.f32.mrb[0].mxu0
    %v831 = vadd.f32 0.0, %v830
    %v832 = vpop.f32.mrb[0].mxu0
    %833 = vmatprep.mubr.bf16.mxu0 0
    %834 = vmatmul.mubr.bf16.gmra.mrb[0].mxu0 %v646
    %v835 = vpop.f32.mrb[0].mxu0
    %v836 = vadd.f32 0.0, %v835
    %v837 = vpop.f32.mrb[0].mxu0
    %v838 = vpop.f32.mrb[0].mxu0
    %v839 = vadd.f32 0.0, %v838
    %v840 = vpop.f32.mrb[0].mxu0
    %841 = vmatprep.mubr.bf16.mxu0 0
    %842 = vmatmul.mubr.bf16.gmra.mrb[0].mxu0 %v647
    %v843 = vpop.f32.mrb[0].mxu0
    %v844 = vadd.f32 0.0, %v843
    %v845 = vpop.f32.mrb[0].mxu0
    %v846 = vpop.f32.mrb[0].mxu0
    %v847 = vadd.f32 0.0, %v846
    %v848 = vpop.f32.mrb[0].mxu0
    %849 = vdwg.mxu0
    %v850 = vmax.f32 %v748, 0.0
    %v851 = vmax.f32 %v751, 0.0
    %v852 = vmax.f32 %v756, 0.0
    %v853 = vmax.f32 %v759, 0.0
    %v854 = vmax.f32 %v764, 0.0
    %v855 = vmax.f32 %v767, 0.0
    %v856 = vmax.f32 %v772, 0.0
    %v857 = vmax.f32 %v775, 0.0
    %v858 = vmax.f32 %v780, 0.0
    %v859 = vmax.f32 %v783, 0.0
    %v860 = vmax.f32 %v788, 0.0
    %v861 = vmax.f32 %v791, 0.0
    %v862 = vmax.f32 %v796, 0.0
    %v863 = vmax.f32 %v799, 0.0
    %v864 = vmax.f32 %v804, 0.0
    %v865 = vmax.f32 %v807, 0.0
    %v866 = vmax.f32 %v812, 0.0
    %v867 = vmax.f32 %v815, 0.0
    %v868 = vmax.f32 %v820, 0.0
    %v869 = vmax.f32 %v823, 0.0
    %v870 = vmax.f32 %v828, 0.0
    %v871 = vmax.f32 %v831, 0.0
    %v872 = vmax.f32 %v836, 0.0
    %v873 = vmax.f32 %v839, 0.0
    %v874 = vmax.f32 %v844, 0.0
    %v875 = vmax.f32 %v847, 0.0
    %v876 = vpack.c.bf16 %v851, %v850
    %v877 = vpack.c.bf16 %v853, %v852
    %v878 = vpack.c.bf16 %v855, %v854
    %v879 = vpack.c.bf16 %v857, %v856
    %v880 = vpack.c.bf16 %v859, %v858
    %v881 = vpack.c.bf16 %v861, %v860
    %v882 = vpack.c.bf16 %v863, %v862
    %v883 = vpack.c.bf16 %v865, %v864
    %v884 = vpack.c.bf16 %v867, %v866
    %v885 = vpack.c.bf16 %v869, %v868
    %v886 = vpack.c.bf16 %v871, %v870
    %v887 = vpack.c.bf16 %v873, %v872
    %v888 = vpack.c.bf16 %v875, %v874
    %s889 = scalar_lea.vmem [#allocation2], 192
    %v890 = vld [vmem:[%s889] sm:$0xf]
    %v891 = vld [vmem:[%s889 + $0x4] sm:$0xf]
    %v892 = vld [vmem:[%s889 + $0x8] sm:$0xf]
    %v893 = vld [vmem:[%s889 + $0xc] sm:$0xf]
    %v894 = vld [vmem:[%s889 + $0x10] sm:$0xf]
    %v895 = vld [vmem:[%s889 + $0x14] sm:$0xf]
    %v896 = vld [vmem:[%s889 + $0x18] sm:$0xf]
    %v897 = vld [vmem:[%s889 + $0x1c] sm:$0xf]
    %v898 = vld [vmem:[%s889 + $0x20] sm:$0xf]
    %v899 = vld [vmem:[%s889 + $0x24] sm:$0xf]
    %v900 = vld [vmem:[%s889 + $0x28] sm:$0xf]
    %v901 = vld [vmem:[%s889 + $0x2c] sm:$0xf]
    %v902 = vld [vmem:[%s889 + $0x30] sm:$0xf]
    %v903 = vld [vmem:[%s889 + $0x34] sm:$0xf]
    %v904 = vld [vmem:[%s889 + $0x38] sm:$0xf]
    %v905 = vld [vmem:[%s889 + $0x3c] sm:$0xf]
    %v922 = vunpack.c.l.b16 %v890
    %v923 = vunpack.c.l.b16 %v891
    %v924 = vunpack.c.l.b16 %v892
    %v925 = vunpack.c.l.b16 %v893
    %v926 = vunpack.c.l.b16 %v894
    %v927 = vunpack.c.l.b16 %v895
    %v928 = vunpack.c.l.b16 %v896
    %v929 = vunpack.c.l.b16 %v897
    %v930 = vunpack.c.l.b16 %v898
    %v931 = vunpack.c.l.b16 %v899
    %v932 = vunpack.c.l.b16 %v900
    %v933 = vunpack.c.l.b16 %v901
    %v934 = vunpack.c.l.b16 %v902
    %v935 = vunpack.c.l.b16 %v903
    %v936 = vunpack.c.l.b16 %v904
    %v937 = vunpack.c.l.b16 %v905
    %v938 = vpack.c.b16 %v923, %v922
    %v939 = vpack.c.b16 %v925, %v924
    %v940 = vpack.c.b16 %v927, %v926
    %v941 = vpack.c.b16 %v929, %v928
    %v942 = vpack.c.b16 %v931, %v930
    %v943 = vpack.c.b16 %v933, %v932
    %v944 = vpack.c.b16 %v935, %v934
    %v945 = vpack.c.b16 %v937, %v936
    %954 = vmatprep.subr.bf16.mxu0 0
    %955 = vmatpush1.bf16.msra.mxu0 %v938
    %956 = vmatprep.subr.bf16.mxu0 0
    %957 = vmatpush1.bf16.msra.mxu0 %v939
    %958 = vmatprep.subr.bf16.mxu0 0
    %959 = vmatpush1.bf16.msra.mxu0 %v940
    %960 = vmatprep.subr.bf16.mxu0 0
    %961 = vmatpush1.bf16.msra.mxu0 %v941
    %962 = vmatprep.subr.bf16.mxu0 0
    %963 = vmatpush1.bf16.msra.mxu0 %v942
    %964 = vmatprep.subr.bf16.mxu0 0
    %965 = vmatpush1.bf16.msra.mxu0 %v943
    %966 = vmatprep.subr.bf16.mxu0 0
    %967 = vmatpush1.bf16.msra.mxu0 %v944
    %968 = vmatprep.subr.bf16.mxu0 0
    %969 = vmatpush1.bf16.msra.mxu0 %v945
    %970 = vmatprep.subr.bf16.mxu0 0
    %971 = vmatpush1.bf16.msra.mxu0 0
    %972 = vmatprep.subr.bf16.mxu0 0
    %973 = vmatpush1.bf16.msra.mxu0 0
    %974 = vmatprep.subr.bf16.mxu0 0
    %975 = vmatpush1.bf16.msra.mxu0 0
    %976 = vmatprep.subr.bf16.mxu0 0
    %977 = vmatpush1.bf16.msra.mxu0 0
    %978 = vmatprep.subr.bf16.mxu0 0
    %979 = vmatpush1.bf16.msra.mxu0 0
    %980 = vmatprep.subr.bf16.mxu0 0
    %981 = vmatpush1.bf16.msra.mxu0 0
    %982 = vmatprep.subr.bf16.mxu0 0
    %983 = vmatpush1.bf16.msra.mxu0 0
    %984 = vmatprep.subr.bf16.mxu0 0
    %985 = vmatpush1.bf16.msra.mxu0 0
    %986 = vmatprep.mubr.bf16.mxu0 0
    %987 = vmatmul.mubr.bf16.gmra.mrb[0].mxu0 %v876
    %v988 = vpop.f32.mrb[0].mxu0
    %v989 = vadd.f32 0.0, %v988
    %v990 = vpop.f32.mrb[0].mxu0
    %v991 = vpop.f32.mrb[0].mxu0
    %v992 = vadd.f32 0.0, %v991
    %v993 = vpop.f32.mrb[0].mxu0
    %994 = vmatprep.mubr.bf16.mxu0 0
    %995 = vmatmul.mubr.bf16.gmra.mrb[0].mxu0 %v877
    %v996 = vpop.f32.mrb[0].mxu0
    %v997 = vadd.f32 0.0, %v996
    %v998 = vpop.f32.mrb[0].mxu0
    %v999 = vpop.f32.mrb[0].mxu0
    %v1000 = vadd.f32 0.0, %v999
    %v1001 = vpop.f32.mrb[0].mxu0
    %1002 = vmatprep.mubr.bf16.mxu0 0
    %1003 = vmatmul.mubr.bf16.gmra.mrb[0].mxu0 %v878
    %v1004 = vpop.f32.mrb[0].mxu0
    %v1005 = vadd.f32 0.0, %v1004
    %v1006 = vpop.f32.mrb[0].mxu0
    %v1007 = vpop.f32.mrb[0].mxu0
    %v1008 = vadd.f32 0.0, %v1007
    %v1009 = vpop.f32.mrb[0].mxu0
    %1010 = vmatprep.mubr.bf16.mxu0 0
    %1011 = vmatmul.mubr.bf16.gmra.mrb[0].mxu0 %v879
    %v1012 = vpop.f32.mrb[0].mxu0
    %v1013 = vadd.f32 0.0, %v1012
    %v1014 = vpop.f32.mrb[0].mxu0
    %v1015 = vpop.f32.mrb[0].mxu0
    %v1016 = vadd.f32 0.0, %v1015
    %v1017 = vpop.f32.mrb[0].mxu0
    %1018 = vmatprep.mubr.bf16.mxu0 0
    %1019 = vmatmul.mubr.bf16.gmra.mrb[0].mxu0 %v880
    %v1020 = vpop.f32.mrb[0].mxu0
    %v1021 = vadd.f32 0.0, %v1020
    %v1022 = vpop.f32.mrb[0].mxu0
    %v1023 = vpop.f32.mrb[0].mxu0
    %v1024 = vadd.f32 0.0, %v1023
    %v1025 = vpop.f32.mrb[0].mxu0
    %1026 = vmatprep.mubr.bf16.mxu0 0
    %1027 = vmatmul.mubr.bf16.gmra.mrb[0].mxu0 %v881
    %v1028 = vpop.f32.mrb[0].mxu0
    %v1029 = vadd.f32 0.0, %v1028
    %v1030 = vpop.f32.mrb[0].mxu0
    %v1031 = vpop.f32.mrb[0].mxu0
    %v1032 = vadd.f32 0.0, %v1031
    %v1033 = vpop.f32.mrb[0].mxu0
    %1034 = vmatprep.mubr.bf16.mxu0 0
    %1035 = vmatmul.mubr.bf16.gmra.mrb[0].mxu0 %v882
    %v1036 = vpop.f32.mrb[0].mxu0
    %v1037 = vadd.f32 0.0, %v1036
    %v1038 = vpop.f32.mrb[0].mxu0
    %v1039 = vpop.f32.mrb[0].mxu0
    %v1040 = vadd.f32 0.0, %v1039
    %v1041 = vpop.f32.mrb[0].mxu0
    %1042 = vmatprep.mubr.bf16.mxu0 0
    %1043 = vmatmul.mubr.bf16.gmra.mrb[0].mxu0 %v883
    %v1044 = vpop.f32.mrb[0].mxu0
    %v1045 = vadd.f32 0.0, %v1044
    %v1046 = vpop.f32.mrb[0].mxu0
    %v1047 = vpop.f32.mrb[0].mxu0
    %v1048 = vadd.f32 0.0, %v1047
    %v1049 = vpop.f32.mrb[0].mxu0
    %1050 = vmatprep.mubr.bf16.mxu0 0
    %1051 = vmatmul.mubr.bf16.gmra.mrb[0].mxu0 %v884
    %v1052 = vpop.f32.mrb[0].mxu0
    %v1053 = vadd.f32 0.0, %v1052
    %v1054 = vpop.f32.mrb[0].mxu0
    %v1055 = vpop.f32.mrb[0].mxu0
    %v1056 = vadd.f32 0.0, %v1055
    %v1057 = vpop.f32.mrb[0].mxu0
    %1058 = vmatprep.mubr.bf16.mxu0 0
    %1059 = vmatmul.mubr.bf16.gmra.mrb[0].mxu0 %v885
    %v1060 = vpop.f32.mrb[0].mxu0
    %v1061 = vadd.f32 0.0, %v1060
    %v1062 = vpop.f32.mrb[0].mxu0
    %v1063 = vpop.f32.mrb[0].mxu0
    %v1064 = vadd.f32 0.0, %v1063
    %v1065 = vpop.f32.mrb[0].mxu0
    %1066 = vmatprep.mubr.bf16.mxu0 0
    %1067 = vmatmul.mubr.bf16.gmra.mrb[0].mxu0 %v886
    %v1068 = vpop.f32.mrb[0].mxu0
    %v1069 = vadd.f32 0.0, %v1068
    %v1070 = vpop.f32.mrb[0].mxu0
    %v1071 = vpop.f32.mrb[0].mxu0
    %v1072 = vadd.f32 0.0, %v1071
    %v1073 = vpop.f32.mrb[0].mxu0
    %1074 = vmatprep.mubr.bf16.mxu0 0
    %1075 = vmatmul.mubr.bf16.gmra.mrb[0].mxu0 %v887
    %v1076 = vpop.f32.mrb[0].mxu0
    %v1077 = vadd.f32 0.0, %v1076
    %v1078 = vpop.f32.mrb[0].mxu0
    %v1079 = vpop.f32.mrb[0].mxu0
    %v1080 = vadd.f32 0.0, %v1079
    %v1081 = vpop.f32.mrb[0].mxu0
    %1082 = vmatprep.mubr.bf16.mxu0 0
    %1083 = vmatmul.mubr.bf16.gmra.mrb[0].mxu0 %v888
    %v1084 = vpop.f32.mrb[0].mxu0
    %v1085 = vadd.f32 0.0, %v1084
    %v1086 = vpop.f32.mrb[0].mxu0
    %v1087 = vpop.f32.mrb[0].mxu0
    %v1088 = vadd.f32 0.0, %v1087
    %v1089 = vpop.f32.mrb[0].mxu0
    %1090 = vdwg.mxu0
    %v1091 = vmax.f32 %v989, 0.0
    %v1092 = vmax.f32 %v992, 0.0
    %v1093 = vmax.f32 %v997, 0.0
    %v1094 = vmax.f32 %v1000, 0.0
    %v1095 = vmax.f32 %v1005, 0.0
    %v1096 = vmax.f32 %v1008, 0.0
    %v1097 = vmax.f32 %v1013, 0.0
    %v1098 = vmax.f32 %v1016, 0.0
    %v1099 = vmax.f32 %v1021, 0.0
    %v1100 = vmax.f32 %v1024, 0.0
    %v1101 = vmax.f32 %v1029, 0.0
    %v1102 = vmax.f32 %v1032, 0.0
    %v1103 = vmax.f32 %v1037, 0.0
    %v1104 = vmax.f32 %v1040, 0.0
    %v1105 = vmax.f32 %v1045, 0.0
    %v1106 = vmax.f32 %v1048, 0.0
    %v1107 = vmax.f32 %v1053, 0.0
    %v1108 = vmax.f32 %v1056, 0.0
    %v1109 = vmax.f32 %v1061, 0.0
    %v1110 = vmax.f32 %v1064, 0.0
    %v1111 = vmax.f32 %v1069, 0.0
    %v1112 = vmax.f32 %v1072, 0.0
    %v1113 = vmax.f32 %v1077, 0.0
    %v1114 = vmax.f32 %v1080, 0.0
    %v1115 = vmax.f32 %v1085, 0.0
    %v1116 = vmax.f32 %v1088, 0.0
    %v1117 = vpack.c.bf16 %v1092, %v1091
    %v1118 = vpack.c.bf16 %v1094, %v1093
    %v1119 = vpack.c.bf16 %v1096, %v1095
    %v1120 = vpack.c.bf16 %v1098, %v1097
    %v1121 = vpack.c.bf16 %v1100, %v1099
    %v1122 = vpack.c.bf16 %v1102, %v1101
    %v1123 = vpack.c.bf16 %v1104, %v1103
    %v1124 = vpack.c.bf16 %v1106, %v1105
    %v1125 = vpack.c.bf16 %v1108, %v1107
    %v1126 = vpack.c.bf16 %v1110, %v1109
    %v1127 = vpack.c.bf16 %v1112, %v1111
    %v1128 = vpack.c.bf16 %v1114, %v1113
    %v1129 = vpack.c.bf16 %v1116, %v1115
    %s1130 = scalar_lea.vmem [#allocation2], 256
    %v1131 = vld [vmem:[%s1130] sm:$0xf]
    %v1132 = vld [vmem:[%s1130 + $0x4] sm:$0xf]
    %v1133 = vld [vmem:[%s1130 + $0x8] sm:$0xf]
    %v1134 = vld [vmem:[%s1130 + $0xc] sm:$0xf]
    %v1135 = vld [vmem:[%s1130 + $0x10] sm:$0xf]
    %v1136 = vld [vmem:[%s1130 + $0x14] sm:$0xf]
    %v1137 = vld [vmem:[%s1130 + $0x18] sm:$0xf]
    %v1138 = vld [vmem:[%s1130 + $0x1c] sm:$0xf]
    %v1139 = vld [vmem:[%s1130 + $0x20] sm:$0xf]
    %v1140 = vld [vmem:[%s1130 + $0x24] sm:$0xf]
    %v1141 = vld [vmem:[%s1130 + $0x28] sm:$0xf]
    %v1142 = vld [vmem:[%s1130 + $0x2c] sm:$0xf]
    %v1143 = vld [vmem:[%s1130 + $0x30] sm:$0xf]
    %v1144 = vld [vmem:[%s1130 + $0x34] sm:$0xf]
    %v1145 = vld [vmem:[%s1130 + $0x38] sm:$0xf]
    %v1146 = vld [vmem:[%s1130 + $0x3c] sm:$0xf]
    %v1163 = vunpack.c.l.b16 %v1131
    %v1164 = vunpack.c.l.b16 %v1132
    %v1165 = vunpack.c.l.b16 %v1133
    %v1166 = vunpack.c.l.b16 %v1134
    %v1167 = vunpack.c.l.b16 %v1135
    %v1168 = vunpack.c.l.b16 %v1136
    %v1169 = vunpack.c.l.b16 %v1137
    %v1170 = vunpack.c.l.b16 %v1138
    %v1171 = vunpack.c.l.b16 %v1139
    %v1172 = vunpack.c.l.b16 %v1140
    %v1173 = vunpack.c.l.b16 %v1141
    %v1174 = vunpack.c.l.b16 %v1142
    %v1175 = vunpack.c.l.b16 %v1143
    %v1176 = vunpack.c.l.b16 %v1144
    %v1177 = vunpack.c.l.b16 %v1145
    %v1178 = vunpack.c.l.b16 %v1146
    %v1179 = vpack.c.b16 %v1164, %v1163
    %v1180 = vpack.c.b16 %v1166, %v1165
    %v1181 = vpack.c.b16 %v1168, %v1167
    %v1182 = vpack.c.b16 %v1170, %v1169
    %v1183 = vpack.c.b16 %v1172, %v1171
    %v1184 = vpack.c.b16 %v1174, %v1173
    %v1185 = vpack.c.b16 %v1176, %v1175
    %v1186 = vpack.c.b16 %v1178, %v1177
    %1195 = vmatprep.subr.bf16.mxu0 0
    %1196 = vmatpush1.bf16.msra.mxu0 %v1179
    %1197 = vmatprep.subr.bf16.mxu0 0
    %1198 = vmatpush1.bf16.msra.mxu0 %v1180
    %1199 = vmatprep.subr.bf16.mxu0 0
    %1200 = vmatpush1.bf16.msra.mxu0 %v1181
    %1201 = vmatprep.subr.bf16.mxu0 0
    %1202 = vmatpush1.bf16.msra.mxu0 %v1182
    %1203 = vmatprep.subr.bf16.mxu0 0
    %1204 = vmatpush1.bf16.msra.mxu0 %v1183
    %1205 = vmatprep.subr.bf16.mxu0 0
    %1206 = vmatpush1.bf16.msra.mxu0 %v1184
    %1207 = vmatprep.subr.bf16.mxu0 0
    %1208 = vmatpush1.bf16.msra.mxu0 %v1185
    %1209 = vmatprep.subr.bf16.mxu0 0
    %1210 = vmatpush1.bf16.msra.mxu0 %v1186
    %1211 = vmatprep.subr.bf16.mxu0 0
    %1212 = vmatpush1.bf16.msra.mxu0 0
    %1213 = vmatprep.subr.bf16.mxu0 0
    %1214 = vmatpush1.bf16.msra.mxu0 0
    %1215 = vmatprep.subr.bf16.mxu0 0
    %1216 = vmatpush1.bf16.msra.mxu0 0
    %1217 = vmatprep.subr.bf16.mxu0 0
    %1218 = vmatpush1.bf16.msra.mxu0 0
    %1219 = vmatprep.subr.bf16.mxu0 0
    %1220 = vmatpush1.bf16.msra.mxu0 0
    %1221 = vmatprep.subr.bf16.mxu0 0
    %1222 = vmatpush1.bf16.msra.mxu0 0
    %1223 = vmatprep.subr.bf16.mxu0 0
    %1224 = vmatpush1.bf16.msra.mxu0 0
    %1225 = vmatprep.subr.bf16.mxu0 0
    %1226 = vmatpush1.bf16.msra.mxu0 0
    %1227 = vmatprep.mubr.bf16.mxu0 0
    %1228 = vmatmul.mubr.bf16.gmra.mrb[0].mxu0 %v1117
    %v1229 = vpop.f32.mrb[0].mxu0
    %v1230 = vadd.f32 0.0, %v1229
    %v1231 = vpop.f32.mrb[0].mxu0
    %v1232 = vpop.f32.mrb[0].mxu0
    %v1233 = vadd.f32 0.0, %v1232
    %v1234 = vpop.f32.mrb[0].mxu0
    %1235 = vmatprep.mubr.bf16.mxu0 0
    %1236 = vmatmul.mubr.bf16.gmra.mrb[0].mxu0 %v1118
    %v1237 = vpop.f32.mrb[0].mxu0
    %v1238 = vadd.f32 0.0, %v1237
    %v1239 = vpop.f32.mrb[0].mxu0
    %v1240 = vpop.f32.mrb[0].mxu0
    %v1241 = vadd.f32 0.0, %v1240
    %v1242 = vpop.f32.mrb[0].mxu0
    %1243 = vmatprep.mubr.bf16.mxu0 0
    %1244 = vmatmul.mubr.bf16.gmra.mrb[0].mxu0 %v1119
    %v1245 = vpop.f32.mrb[0].mxu0
    %v1246 = vadd.f32 0.0, %v1245
    %v1247 = vpop.f32.mrb[0].mxu0
    %v1248 = vpop.f32.mrb[0].mxu0
    %v1249 = vadd.f32 0.0, %v1248
    %v1250 = vpop.f32.mrb[0].mxu0
    %1251 = vmatprep.mubr.bf16.mxu0 0
    %1252 = vmatmul.mubr.bf16.gmra.mrb[0].mxu0 %v1120
    %v1253 = vpop.f32.mrb[0].mxu0
    %v1254 = vadd.f32 0.0, %v1253
    %v1255 = vpop.f32.mrb[0].mxu0
    %v1256 = vpop.f32.mrb[0].mxu0
    %v1257 = vadd.f32 0.0, %v1256
    %v1258 = vpop.f32.mrb[0].mxu0
    %1259 = vmatprep.mubr.bf16.mxu0 0
    %1260 = vmatmul.mubr.bf16.gmra.mrb[0].mxu0 %v1121
    %v1261 = vpop.f32.mrb[0].mxu0
    %v1262 = vadd.f32 0.0, %v1261
    %v1263 = vpop.f32.mrb[0].mxu0
    %v1264 = vpop.f32.mrb[0].mxu0
    %v1265 = vadd.f32 0.0, %v1264
    %v1266 = vpop.f32.mrb[0].mxu0
    %1267 = vmatprep.mubr.bf16.mxu0 0
    %1268 = vmatmul.mubr.bf16.gmra.mrb[0].mxu0 %v1122
    %v1269 = vpop.f32.mrb[0].mxu0
    %v1270 = vadd.f32 0.0, %v1269
    %v1271 = vpop.f32.mrb[0].mxu0
    %v1272 = vpop.f32.mrb[0].mxu0
    %v1273 = vadd.f32 0.0, %v1272
    %v1274 = vpop.f32.mrb[0].mxu0
    %1275 = vmatprep.mubr.bf16.mxu0 0
    %1276 = vmatmul.mubr.bf16.gmra.mrb[0].mxu0 %v1123
    %v1277 = vpop.f32.mrb[0].mxu0
    %v1278 = vadd.f32 0.0, %v1277
    %v1279 = vpop.f32.mrb[0].mxu0
    %v1280 = vpop.f32.mrb[0].mxu0
    %v1281 = vadd.f32 0.0, %v1280
    %v1282 = vpop.f32.mrb[0].mxu0
    %1283 = vmatprep.mubr.bf16.mxu0 0
    %1284 = vmatmul.mubr.bf16.gmra.mrb[0].mxu0 %v1124
    %v1285 = vpop.f32.mrb[0].mxu0
    %v1286 = vadd.f32 0.0, %v1285
    %v1287 = vpop.f32.mrb[0].mxu0
    %v1288 = vpop.f32.mrb[0].mxu0
    %v1289 = vadd.f32 0.0, %v1288
    %v1290 = vpop.f32.mrb[0].mxu0
    %1291 = vmatprep.mubr.bf16.mxu0 0
    %1292 = vmatmul.mubr.bf16.gmra.mrb[0].mxu0 %v1125
    %v1293 = vpop.f32.mrb[0].mxu0
    %v1294 = vadd.f32 0.0, %v1293
    %v1295 = vpop.f32.mrb[0].mxu0
    %v1296 = vpop.f32.mrb[0].mxu0
    %v1297 = vadd.f32 0.0, %v1296
    %v1298 = vpop.f32.mrb[0].mxu0
    %1299 = vmatprep.mubr.bf16.mxu0 0
    %1300 = vmatmul.mubr.bf16.gmra.mrb[0].mxu0 %v1126
    %v1301 = vpop.f32.mrb[0].mxu0
    %v1302 = vadd.f32 0.0, %v1301
    %v1303 = vpop.f32.mrb[0].mxu0
    %v1304 = vpop.f32.mrb[0].mxu0
    %v1305 = vadd.f32 0.0, %v1304
    %v1306 = vpop.f32.mrb[0].mxu0
    %1307 = vmatprep.mubr.bf16.mxu0 0
    %1308 = vmatmul.mubr.bf16.gmra.mrb[0].mxu0 %v1127
    %v1309 = vpop.f32.mrb[0].mxu0
    %v1310 = vadd.f32 0.0, %v1309
    %v1311 = vpop.f32.mrb[0].mxu0
    %v1312 = vpop.f32.mrb[0].mxu0
    %v1313 = vadd.f32 0.0, %v1312
    %v1314 = vpop.f32.mrb[0].mxu0
    %1315 = vmatprep.mubr.bf16.mxu0 0
    %1316 = vmatmul.mubr.bf16.gmra.mrb[0].mxu0 %v1128
    %v1317 = vpop.f32.mrb[0].mxu0
    %v1318 = vadd.f32 0.0, %v1317
    %v1319 = vpop.f32.mrb[0].mxu0
    %v1320 = vpop.f32.mrb[0].mxu0
    %v1321 = vadd.f32 0.0, %v1320
    %v1322 = vpop.f32.mrb[0].mxu0
    %1323 = vmatprep.mubr.bf16.mxu0 0
    %1324 = vmatmul.mubr.bf16.gmra.mrb[0].mxu0 %v1129
    %v1325 = vpop.f32.mrb[0].mxu0
    %v1326 = vadd.f32 0.0, %v1325
    %v1327 = vpop.f32.mrb[0].mxu0
    %v1328 = vpop.f32.mrb[0].mxu0
    %v1329 = vadd.f32 0.0, %v1328
    %v1330 = vpop.f32.mrb[0].mxu0
    %1331 = vdwg.mxu0
    %v1332 = vmax.f32 %v1230, 0.0
    %v1333 = vmax.f32 %v1233, 0.0
    %v1334 = vmax.f32 %v1238, 0.0
    %v1335 = vmax.f32 %v1241, 0.0
    %v1336 = vmax.f32 %v1246, 0.0
    %v1337 = vmax.f32 %v1249, 0.0
    %v1338 = vmax.f32 %v1254, 0.0
    %v1339 = vmax.f32 %v1257, 0.0
    %v1340 = vmax.f32 %v1262, 0.0
    %v1341 = vmax.f32 %v1265, 0.0
    %v1342 = vmax.f32 %v1270, 0.0
    %v1343 = vmax.f32 %v1273, 0.0
    %v1344 = vmax.f32 %v1278, 0.0
    %v1345 = vmax.f32 %v1281, 0.0
    %v1346 = vmax.f32 %v1286, 0.0
    %v1347 = vmax.f32 %v1289, 0.0
    %v1348 = vmax.f32 %v1294, 0.0
    %v1349 = vmax.f32 %v1297, 0.0
    %v1350 = vmax.f32 %v1302, 0.0
    %v1351 = vmax.f32 %v1305, 0.0
    %v1352 = vmax.f32 %v1310, 0.0
    %v1353 = vmax.f32 %v1313, 0.0
    %v1354 = vmax.f32 %v1318, 0.0
    %v1355 = vmax.f32 %v1321, 0.0
    %v1356 = vmax.f32 %v1326, 0.0
    %v1357 = vmax.f32 %v1329, 0.0
    %v1358 = vpack.c.bf16 %v1333, %v1332
    %v1359 = vpack.c.bf16 %v1335, %v1334
    %v1360 = vpack.c.bf16 %v1337, %v1336
    %v1361 = vpack.c.bf16 %v1339, %v1338
    %v1362 = vpack.c.bf16 %v1341, %v1340
    %v1363 = vpack.c.bf16 %v1343, %v1342
    %v1364 = vpack.c.bf16 %v1345, %v1344
    %v1365 = vpack.c.bf16 %v1347, %v1346
    %v1366 = vpack.c.bf16 %v1349, %v1348
    %v1367 = vpack.c.bf16 %v1351, %v1350
    %v1368 = vpack.c.bf16 %v1353, %v1352
    %v1369 = vpack.c.bf16 %v1355, %v1354
    %v1370 = vpack.c.bf16 %v1357, %v1356
    %s1371 = scalar_lea.vmem [#allocation2], 320
    %v1372 = vld [vmem:[%s1371] sm:$0xf]
    %v1373 = vld [vmem:[%s1371 + $0x4] sm:$0xf]
    %v1374 = vld [vmem:[%s1371 + $0x8] sm:$0xf]
    %v1375 = vld [vmem:[%s1371 + $0xc] sm:$0xf]
    %v1376 = vld [vmem:[%s1371 + $0x10] sm:$0xf]
    %v1377 = vld [vmem:[%s1371 + $0x14] sm:$0xf]
    %v1378 = vld [vmem:[%s1371 + $0x18] sm:$0xf]
    %v1379 = vld [vmem:[%s1371 + $0x1c] sm:$0xf]
    %v1380 = vld [vmem:[%s1371 + $0x20] sm:$0xf]
    %v1381 = vld [vmem:[%s1371 + $0x24] sm:$0xf]
    %v1382 = vld [vmem:[%s1371 + $0x28] sm:$0xf]
    %v1383 = vld [vmem:[%s1371 + $0x2c] sm:$0xf]
    %v1384 = vld [vmem:[%s1371 + $0x30] sm:$0xf]
    %v1385 = vld [vmem:[%s1371 + $0x34] sm:$0xf]
    %v1386 = vld [vmem:[%s1371 + $0x38] sm:$0xf]
    %v1387 = vld [vmem:[%s1371 + $0x3c] sm:$0xf]
    %v1404 = vunpack.c.l.b16 %v1372
    %v1405 = vunpack.c.l.b16 %v1373
    %v1406 = vunpack.c.l.b16 %v1374
    %v1407 = vunpack.c.l.b16 %v1375
    %v1408 = vunpack.c.l.b16 %v1376
    %v1409 = vunpack.c.l.b16 %v1377
    %v1410 = vunpack.c.l.b16 %v1378
    %v1411 = vunpack.c.l.b16 %v1379
    %v1412 = vunpack.c.l.b16 %v1380
    %v1413 = vunpack.c.l.b16 %v1381
    %v1414 = vunpack.c.l.b16 %v1382
    %v1415 = vunpack.c.l.b16 %v1383
    %v1416 = vunpack.c.l.b16 %v1384
    %v1417 = vunpack.c.l.b16 %v1385
    %v1418 = vunpack.c.l.b16 %v1386
    %v1419 = vunpack.c.l.b16 %v1387
    %v1420 = vpack.c.b16 %v1405, %v1404
    %v1421 = vpack.c.b16 %v1407, %v1406
    %v1422 = vpack.c.b16 %v1409, %v1408
    %v1423 = vpack.c.b16 %v1411, %v1410
    %v1424 = vpack.c.b16 %v1413, %v1412
    %v1425 = vpack.c.b16 %v1415, %v1414
    %v1426 = vpack.c.b16 %v1417, %v1416
    %v1427 = vpack.c.b16 %v1419, %v1418
    %1436 = vmatprep.subr.bf16.mxu0 0
    %1437 = vmatpush1.bf16.msra.mxu0 %v1420
    %1438 = vmatprep.subr.bf16.mxu0 0
    %1439 = vmatpush1.bf16.msra.mxu0 %v1421
    %1440 = vmatprep.subr.bf16.mxu0 0
    %1441 = vmatpush1.bf16.msra.mxu0 %v1422
    %1442 = vmatprep.subr.bf16.mxu0 0
    %1443 = vmatpush1.bf16.msra.mxu0 %v1423
    %1444 = vmatprep.subr.bf16.mxu0 0
    %1445 = vmatpush1.bf16.msra.mxu0 %v1424
    %1446 = vmatprep.subr.bf16.mxu0 0
    %1447 = vmatpush1.bf16.msra.mxu0 %v1425
    %1448 = vmatprep.subr.bf16.mxu0 0
    %1449 = vmatpush1.bf16.msra.mxu0 %v1426
    %1450 = vmatprep.subr.bf16.mxu0 0
    %1451 = vmatpush1.bf16.msra.mxu0 %v1427
    %1452 = vmatprep.subr.bf16.mxu0 0
    %1453 = vmatpush1.bf16.msra.mxu0 0
    %1454 = vmatprep.subr.bf16.mxu0 0
    %1455 = vmatpush1.bf16.msra.mxu0 0
    %1456 = vmatprep.subr.bf16.mxu0 0
    %1457 = vmatpush1.bf16.msra.mxu0 0
    %1458 = vmatprep.subr.bf16.mxu0 0
    %1459 = vmatpush1.bf16.msra.mxu0 0
    %1460 = vmatprep.subr.bf16.mxu0 0
    %1461 = vmatpush1.bf16.msra.mxu0 0
    %1462 = vmatprep.subr.bf16.mxu0 0
    %1463 = vmatpush1.bf16.msra.mxu0 0
    %1464 = vmatprep.subr.bf16.mxu0 0
    %1465 = vmatpush1.bf16.msra.mxu0 0
    %1466 = vmatprep.subr.bf16.mxu0 0
    %1467 = vmatpush1.bf16.msra.mxu0 0
    %1468 = vmatprep.mubr.bf16.mxu0 0
    %1469 = vmatmul.mubr.bf16.gmra.mrb[0].mxu0 %v1358
    %v1470 = vpop.f32.mrb[0].mxu0
    %v1471 = vadd.f32 0.0, %v1470
    %v1472 = vpop.f32.mrb[0].mxu0
    %v1473 = vpop.f32.mrb[0].mxu0
    %v1474 = vadd.f32 0.0, %v1473
    %v1475 = vpop.f32.mrb[0].mxu0
    %1476 = vmatprep.mubr.bf16.mxu0 0
    %1477 = vmatmul.mubr.bf16.gmra.mrb[0].mxu0 %v1359
    %v1478 = vpop.f32.mrb[0].mxu0
    %v1479 = vadd.f32 0.0, %v1478
    %v1480 = vpop.f32.mrb[0].mxu0
    %v1481 = vpop.f32.mrb[0].mxu0
    %v1482 = vadd.f32 0.0, %v1481
    %v1483 = vpop.f32.mrb[0].mxu0
    %1484 = vmatprep.mubr.bf16.mxu0 0
    %1485 = vmatmul.mubr.bf16.gmra.mrb[0].mxu0 %v1360
    %v1486 = vpop.f32.mrb[0].mxu0
    %v1487 = vadd.f32 0.0, %v1486
    %v1488 = vpop.f32.mrb[0].mxu0
    %v1489 = vpop.f32.mrb[0].mxu0
    %v1490 = vadd.f32 0.0, %v1489
    %v1491 = vpop.f32.mrb[0].mxu0
    %1492 = vmatprep.mubr.bf16.mxu0 0
    %1493 = vmatmul.mubr.bf16.gmra.mrb[0].mxu0 %v1361
    %v1494 = vpop.f32.mrb[0].mxu0
    %v1495 = vadd.f32 0.0, %v1494
    %v1496 = vpop.f32.mrb[0].mxu0
    %v1497 = vpop.f32.mrb[0].mxu0
    %v1498 = vadd.f32 0.0, %v1497
    %v1499 = vpop.f32.mrb[0].mxu0
    %1500 = vmatprep.mubr.bf16.mxu0 0
    %1501 = vmatmul.mubr.bf16.gmra.mrb[0].mxu0 %v1362
    %v1502 = vpop.f32.mrb[0].mxu0
    %v1503 = vadd.f32 0.0, %v1502
    %v1504 = vpop.f32.mrb[0].mxu0
    %v1505 = vpop.f32.mrb[0].mxu0
    %v1506 = vadd.f32 0.0, %v1505
    %v1507 = vpop.f32.mrb[0].mxu0
    %1508 = vmatprep.mubr.bf16.mxu0 0
    %1509 = vmatmul.mubr.bf16.gmra.mrb[0].mxu0 %v1363
    %v1510 = vpop.f32.mrb[0].mxu0
    %v1511 = vadd.f32 0.0, %v1510
    %v1512 = vpop.f32.mrb[0].mxu0
    %v1513 = vpop.f32.mrb[0].mxu0
    %v1514 = vadd.f32 0.0, %v1513
    %v1515 = vpop.f32.mrb[0].mxu0
    %1516 = vmatprep.mubr.bf16.mxu0 0
    %1517 = vmatmul.mubr.bf16.gmra.mrb[0].mxu0 %v1364
    %v1518 = vpop.f32.mrb[0].mxu0
    %v1519 = vadd.f32 0.0, %v1518
    %v1520 = vpop.f32.mrb[0].mxu0
    %v1521 = vpop.f32.mrb[0].mxu0
    %v1522 = vadd.f32 0.0, %v1521
    %v1523 = vpop.f32.mrb[0].mxu0
    %1524 = vmatprep.mubr.bf16.mxu0 0
    %1525 = vmatmul.mubr.bf16.gmra.mrb[0].mxu0 %v1365
    %v1526 = vpop.f32.mrb[0].mxu0
    %v1527 = vadd.f32 0.0, %v1526
    %v1528 = vpop.f32.mrb[0].mxu0
    %v1529 = vpop.f32.mrb[0].mxu0
    %v1530 = vadd.f32 0.0, %v1529
    %v1531 = vpop.f32.mrb[0].mxu0
    %1532 = vmatprep.mubr.bf16.mxu0 0
    %1533 = vmatmul.mubr.bf16.gmra.mrb[0].mxu0 %v1366
    %v1534 = vpop.f32.mrb[0].mxu0
    %v1535 = vadd.f32 0.0, %v1534
    %v1536 = vpop.f32.mrb[0].mxu0
    %v1537 = vpop.f32.mrb[0].mxu0
    %v1538 = vadd.f32 0.0, %v1537
    %v1539 = vpop.f32.mrb[0].mxu0
    %1540 = vmatprep.mubr.bf16.mxu0 0
    %1541 = vmatmul.mubr.bf16.gmra.mrb[0].mxu0 %v1367
    %v1542 = vpop.f32.mrb[0].mxu0
    %v1543 = vadd.f32 0.0, %v1542
    %v1544 = vpop.f32.mrb[0].mxu0
    %v1545 = vpop.f32.mrb[0].mxu0
    %v1546 = vadd.f32 0.0, %v1545
    %v1547 = vpop.f32.mrb[0].mxu0
    %1548 = vmatprep.mubr.bf16.mxu0 0
    %1549 = vmatmul.mubr.bf16.gmra.mrb[0].mxu0 %v1368
    %v1550 = vpop.f32.mrb[0].mxu0
    %v1551 = vadd.f32 0.0, %v1550
    %v1552 = vpop.f32.mrb[0].mxu0
    %v1553 = vpop.f32.mrb[0].mxu0
    %v1554 = vadd.f32 0.0, %v1553
    %v1555 = vpop.f32.mrb[0].mxu0
    %1556 = vmatprep.mubr.bf16.mxu0 0
    %1557 = vmatmul.mubr.bf16.gmra.mrb[0].mxu0 %v1369
    %v1558 = vpop.f32.mrb[0].mxu0
    %v1559 = vadd.f32 0.0, %v1558
    %v1560 = vpop.f32.mrb[0].mxu0
    %v1561 = vpop.f32.mrb[0].mxu0
    %v1562 = vadd.f32 0.0, %v1561
    %v1563 = vpop.f32.mrb[0].mxu0
    %1564 = vmatprep.mubr.bf16.mxu0 0
    %1565 = vmatmul.mubr.bf16.gmra.mrb[0].mxu0 %v1370
    %v1566 = vpop.f32.mrb[0].mxu0
    %v1567 = vadd.f32 0.0, %v1566
    %v1568 = vpop.f32.mrb[0].mxu0
    %v1569 = vpop.f32.mrb[0].mxu0
    %v1570 = vadd.f32 0.0, %v1569
    %v1571 = vpop.f32.mrb[0].mxu0
    %1572 = vdwg.mxu0
    %v1573 = vmax.f32 %v1471, 0.0
    %v1574 = vmax.f32 %v1474, 0.0
    %v1575 = vmax.f32 %v1479, 0.0
    %v1576 = vmax.f32 %v1482, 0.0
    %v1577 = vmax.f32 %v1487, 0.0
    %v1578 = vmax.f32 %v1490, 0.0
    %v1579 = vmax.f32 %v1495, 0.0
    %v1580 = vmax.f32 %v1498, 0.0
    %v1581 = vmax.f32 %v1503, 0.0
    %v1582 = vmax.f32 %v1506, 0.0
    %v1583 = vmax.f32 %v1511, 0.0
    %v1584 = vmax.f32 %v1514, 0.0
    %v1585 = vmax.f32 %v1519, 0.0
    %v1586 = vmax.f32 %v1522, 0.0
    %v1587 = vmax.f32 %v1527, 0.0
    %v1588 = vmax.f32 %v1530, 0.0
    %v1589 = vmax.f32 %v1535, 0.0
    %v1590 = vmax.f32 %v1538, 0.0
    %v1591 = vmax.f32 %v1543, 0.0
    %v1592 = vmax.f32 %v1546, 0.0
    %v1593 = vmax.f32 %v1551, 0.0
    %v1594 = vmax.f32 %v1554, 0.0
    %v1595 = vmax.f32 %v1559, 0.0
    %v1596 = vmax.f32 %v1562, 0.0
    %v1597 = vmax.f32 %v1567, 0.0
    %v1598 = vmax.f32 %v1570, 0.0
    %v1599 = vpack.c.bf16 %v1574, %v1573
    %v1600 = vpack.c.bf16 %v1576, %v1575
    %v1601 = vpack.c.bf16 %v1578, %v1577
    %v1602 = vpack.c.bf16 %v1580, %v1579
    %v1603 = vpack.c.bf16 %v1582, %v1581
    %v1604 = vpack.c.bf16 %v1584, %v1583
    %v1605 = vpack.c.bf16 %v1586, %v1585
    %v1606 = vpack.c.bf16 %v1588, %v1587
    %v1607 = vpack.c.bf16 %v1590, %v1589
    %v1608 = vpack.c.bf16 %v1592, %v1591
    %v1609 = vpack.c.bf16 %v1594, %v1593
    %v1610 = vpack.c.bf16 %v1596, %v1595
    %v1611 = vpack.c.bf16 %v1598, %v1597
    %s1612 = scalar_lea.vmem [#allocation2], 384
    %v1613 = vld [vmem:[%s1612] sm:$0xf]
    %v1614 = vld [vmem:[%s1612 + $0x4] sm:$0xf]
    %v1615 = vld [vmem:[%s1612 + $0x8] sm:$0xf]
    %v1616 = vld [vmem:[%s1612 + $0xc] sm:$0xf]
    %v1617 = vld [vmem:[%s1612 + $0x10] sm:$0xf]
    %v1618 = vld [vmem:[%s1612 + $0x14] sm:$0xf]
    %v1619 = vld [vmem:[%s1612 + $0x18] sm:$0xf]
    %v1620 = vld [vmem:[%s1612 + $0x1c] sm:$0xf]
    %v1621 = vld [vmem:[%s1612 + $0x20] sm:$0xf]
    %v1622 = vld [vmem:[%s1612 + $0x24] sm:$0xf]
    %v1623 = vld [vmem:[%s1612 + $0x28] sm:$0xf]
    %v1624 = vld [vmem:[%s1612 + $0x2c] sm:$0xf]
    %v1625 = vld [vmem:[%s1612 + $0x30] sm:$0xf]
    %v1626 = vld [vmem:[%s1612 + $0x34] sm:$0xf]
    %v1627 = vld [vmem:[%s1612 + $0x38] sm:$0xf]
    %v1628 = vld [vmem:[%s1612 + $0x3c] sm:$0xf]
    %v1645 = vunpack.c.l.b16 %v1613
    %v1646 = vunpack.c.l.b16 %v1614
    %v1647 = vunpack.c.l.b16 %v1615
    %v1648 = vunpack.c.l.b16 %v1616
    %v1649 = vunpack.c.l.b16 %v1617
    %v1650 = vunpack.c.l.b16 %v1618
    %v1651 = vunpack.c.l.b16 %v1619
    %v1652 = vunpack.c.l.b16 %v1620
    %v1653 = vunpack.c.l.b16 %v1621
    %v1654 = vunpack.c.l.b16 %v1622
    %v1655 = vunpack.c.l.b16 %v1623
    %v1656 = vunpack.c.l.b16 %v1624
    %v1657 = vunpack.c.l.b16 %v1625
    %v1658 = vunpack.c.l.b16 %v1626
    %v1659 = vunpack.c.l.b16 %v1627
    %v1660 = vunpack.c.l.b16 %v1628
    %v1661 = vpack.c.b16 %v1646, %v1645
    %v1662 = vpack.c.b16 %v1648, %v1647
    %v1663 = vpack.c.b16 %v1650, %v1649
    %v1664 = vpack.c.b16 %v1652, %v1651
    %v1665 = vpack.c.b16 %v1654, %v1653
    %v1666 = vpack.c.b16 %v1656, %v1655
    %v1667 = vpack.c.b16 %v1658, %v1657
    %v1668 = vpack.c.b16 %v1660, %v1659
    %1677 = vmatprep.subr.bf16.mxu0 0
    %1678 = vmatpush1.bf16.msra.mxu0 %v1661
    %1679 = vmatprep.subr.bf16.mxu0 0
    %1680 = vmatpush1.bf16.msra.mxu0 %v1662
    %1681 = vmatprep.subr.bf16.mxu0 0
    %1682 = vmatpush1.bf16.msra.mxu0 %v1663
    %1683 = vmatprep.subr.bf16.mxu0 0
    %1684 = vmatpush1.bf16.msra.mxu0 %v1664
    %1685 = vmatprep.subr.bf16.mxu0 0
    %1686 = vmatpush1.bf16.msra.mxu0 %v1665
    %1687 = vmatprep.subr.bf16.mxu0 0
    %1688 = vmatpush1.bf16.msra.mxu0 %v1666
    %1689 = vmatprep.subr.bf16.mxu0 0
    %1690 = vmatpush1.bf16.msra.mxu0 %v1667
    %1691 = vmatprep.subr.bf16.mxu0 0
    %1692 = vmatpush1.bf16.msra.mxu0 %v1668
    %1693 = vmatprep.subr.bf16.mxu0 0
    %1694 = vmatpush1.bf16.msra.mxu0 0
    %1695 = vmatprep.subr.bf16.mxu0 0
    %1696 = vmatpush1.bf16.msra.mxu0 0
    %1697 = vmatprep.subr.bf16.mxu0 0
    %1698 = vmatpush1.bf16.msra.mxu0 0
    %1699 = vmatprep.subr.bf16.mxu0 0
    %1700 = vmatpush1.bf16.msra.mxu0 0
    %1701 = vmatprep.subr.bf16.mxu0 0
    %1702 = vmatpush1.bf16.msra.mxu0 0
    %1703 = vmatprep.subr.bf16.mxu0 0
    %1704 = vmatpush1.bf16.msra.mxu0 0
    %1705 = vmatprep.subr.bf16.mxu0 0
    %1706 = vmatpush1.bf16.msra.mxu0 0
    %1707 = vmatprep.subr.bf16.mxu0 0
    %1708 = vmatpush1.bf16.msra.mxu0 0
    %1709 = vmatprep.mubr.bf16.mxu0 0
    %1710 = vmatmul.mubr.bf16.gmra.mrb[0].mxu0 %v1599
    %v1711 = vpop.f32.mrb[0].mxu0
    %v1712 = vadd.f32 0.0, %v1711
    %v1713 = vpop.f32.mrb[0].mxu0
    %v1714 = vpop.f32.mrb[0].mxu0
    %v1715 = vadd.f32 0.0, %v1714
    %v1716 = vpop.f32.mrb[0].mxu0
    %1717 = vmatprep.mubr.bf16.mxu0 0
    %1718 = vmatmul.mubr.bf16.gmra.mrb[0].mxu0 %v1600
    %v1719 = vpop.f32.mrb[0].mxu0
    %v1720 = vadd.f32 0.0, %v1719
    %v1721 = vpop.f32.mrb[0].mxu0
    %v1722 = vpop.f32.mrb[0].mxu0
    %v1723 = vadd.f32 0.0, %v1722
    %v1724 = vpop.f32.mrb[0].mxu0
    %1725 = vmatprep.mubr.bf16.mxu0 0
    %1726 = vmatmul.mubr.bf16.gmra.mrb[0].mxu0 %v1601
    %v1727 = vpop.f32.mrb[0].mxu0
    %v1728 = vadd.f32 0.0, %v1727
    %v1729 = vpop.f32.mrb[0].mxu0
    %v1730 = vpop.f32.mrb[0].mxu0
    %v1731 = vadd.f32 0.0, %v1730
    %v1732 = vpop.f32.mrb[0].mxu0
    %1733 = vmatprep.mubr.bf16.mxu0 0
    %1734 = vmatmul.mubr.bf16.gmra.mrb[0].mxu0 %v1602
    %v1735 = vpop.f32.mrb[0].mxu0
    %v1736 = vadd.f32 0.0, %v1735
    %v1737 = vpop.f32.mrb[0].mxu0
    %v1738 = vpop.f32.mrb[0].mxu0
    %v1739 = vadd.f32 0.0, %v1738
    %v1740 = vpop.f32.mrb[0].mxu0
    %1741 = vmatprep.mubr.bf16.mxu0 0
    %1742 = vmatmul.mubr.bf16.gmra.mrb[0].mxu0 %v1603
    %v1743 = vpop.f32.mrb[0].mxu0
    %v1744 = vadd.f32 0.0, %v1743
    %v1745 = vpop.f32.mrb[0].mxu0
    %v1746 = vpop.f32.mrb[0].mxu0
    %v1747 = vadd.f32 0.0, %v1746
    %v1748 = vpop.f32.mrb[0].mxu0
    %1749 = vmatprep.mubr.bf16.mxu0 0
    %1750 = vmatmul.mubr.bf16.gmra.mrb[0].mxu0 %v1604
    %v1751 = vpop.f32.mrb[0].mxu0
    %v1752 = vadd.f32 0.0, %v1751
    %v1753 = vpop.f32.mrb[0].mxu0
    %v1754 = vpop.f32.mrb[0].mxu0
    %v1755 = vadd.f32 0.0, %v1754
    %v1756 = vpop.f32.mrb[0].mxu0
    %1757 = vmatprep.mubr.bf16.mxu0 0
    %1758 = vmatmul.mubr.bf16.gmra.mrb[0].mxu0 %v1605
    %v1759 = vpop.f32.mrb[0].mxu0
    %v1760 = vadd.f32 0.0, %v1759
    %v1761 = vpop.f32.mrb[0].mxu0
    %v1762 = vpop.f32.mrb[0].mxu0
    %v1763 = vadd.f32 0.0, %v1762
    %v1764 = vpop.f32.mrb[0].mxu0
    %1765 = vmatprep.mubr.bf16.mxu0 0
    %1766 = vmatmul.mubr.bf16.gmra.mrb[0].mxu0 %v1606
    %v1767 = vpop.f32.mrb[0].mxu0
    %v1768 = vadd.f32 0.0, %v1767
    %v1769 = vpop.f32.mrb[0].mxu0
    %v1770 = vpop.f32.mrb[0].mxu0
    %v1771 = vadd.f32 0.0, %v1770
    %v1772 = vpop.f32.mrb[0].mxu0
    %1773 = vmatprep.mubr.bf16.mxu0 0
    %1774 = vmatmul.mubr.bf16.gmra.mrb[0].mxu0 %v1607
    %v1775 = vpop.f32.mrb[0].mxu0
    %v1776 = vadd.f32 0.0, %v1775
    %v1777 = vpop.f32.mrb[0].mxu0
    %v1778 = vpop.f32.mrb[0].mxu0
    %v1779 = vadd.f32 0.0, %v1778
    %v1780 = vpop.f32.mrb[0].mxu0
    %1781 = vmatprep.mubr.bf16.mxu0 0
    %1782 = vmatmul.mubr.bf16.gmra.mrb[0].mxu0 %v1608
    %v1783 = vpop.f32.mrb[0].mxu0
    %v1784 = vadd.f32 0.0, %v1783
    %v1785 = vpop.f32.mrb[0].mxu0
    %v1786 = vpop.f32.mrb[0].mxu0
    %v1787 = vadd.f32 0.0, %v1786
    %v1788 = vpop.f32.mrb[0].mxu0
    %1789 = vmatprep.mubr.bf16.mxu0 0
    %1790 = vmatmul.mubr.bf16.gmra.mrb[0].mxu0 %v1609
    %v1791 = vpop.f32.mrb[0].mxu0
    %v1792 = vadd.f32 0.0, %v1791
    %v1793 = vpop.f32.mrb[0].mxu0
    %v1794 = vpop.f32.mrb[0].mxu0
    %v1795 = vadd.f32 0.0, %v1794
    %v1796 = vpop.f32.mrb[0].mxu0
    %1797 = vmatprep.mubr.bf16.mxu0 0
    %1798 = vmatmul.mubr.bf16.gmra.mrb[0].mxu0 %v1610
    %v1799 = vpop.f32.mrb[0].mxu0
    %v1800 = vadd.f32 0.0, %v1799
    %v1801 = vpop.f32.mrb[0].mxu0
    %v1802 = vpop.f32.mrb[0].mxu0
    %v1803 = vadd.f32 0.0, %v1802
    %v1804 = vpop.f32.mrb[0].mxu0
    %1805 = vmatprep.mubr.bf16.mxu0 0
    %1806 = vmatmul.mubr.bf16.gmra.mrb[0].mxu0 %v1611
    %v1807 = vpop.f32.mrb[0].mxu0
    %v1808 = vadd.f32 0.0, %v1807
    %v1809 = vpop.f32.mrb[0].mxu0
    %v1810 = vpop.f32.mrb[0].mxu0
    %v1811 = vadd.f32 0.0, %v1810
    %v1812 = vpop.f32.mrb[0].mxu0
    %1813 = vdwg.mxu0
    %v1814 = vmax.f32 %v1712, 0.0
    %v1815 = vmax.f32 %v1715, 0.0
    %v1816 = vmax.f32 %v1720, 0.0
    %v1817 = vmax.f32 %v1723, 0.0
    %v1818 = vmax.f32 %v1728, 0.0
    %v1819 = vmax.f32 %v1731, 0.0
    %v1820 = vmax.f32 %v1736, 0.0
    %v1821 = vmax.f32 %v1739, 0.0
    %v1822 = vmax.f32 %v1744, 0.0
    %v1823 = vmax.f32 %v1747, 0.0
    %v1824 = vmax.f32 %v1752, 0.0
    %v1825 = vmax.f32 %v1755, 0.0
    %v1826 = vmax.f32 %v1760, 0.0
    %v1827 = vmax.f32 %v1763, 0.0
    %v1828 = vmax.f32 %v1768, 0.0
    %v1829 = vmax.f32 %v1771, 0.0
    %v1830 = vmax.f32 %v1776, 0.0
    %v1831 = vmax.f32 %v1779, 0.0
    %v1832 = vmax.f32 %v1784, 0.0
    %v1833 = vmax.f32 %v1787, 0.0
    %v1834 = vmax.f32 %v1792, 0.0
    %v1835 = vmax.f32 %v1795, 0.0
    %v1836 = vmax.f32 %v1800, 0.0
    %v1837 = vmax.f32 %v1803, 0.0
    %v1838 = vmax.f32 %v1808, 0.0
    %v1839 = vmax.f32 %v1811, 0.0
    %v1840 = vpack.c.bf16 %v1815, %v1814
    %v1841 = vpack.c.bf16 %v1817, %v1816
    %v1842 = vpack.c.bf16 %v1819, %v1818
    %v1843 = vpack.c.bf16 %v1821, %v1820
    %v1844 = vpack.c.bf16 %v1823, %v1822
    %v1845 = vpack.c.bf16 %v1825, %v1824
    %v1846 = vpack.c.bf16 %v1827, %v1826
    %v1847 = vpack.c.bf16 %v1829, %v1828
    %v1848 = vpack.c.bf16 %v1831, %v1830
    %v1849 = vpack.c.bf16 %v1833, %v1832
    %v1850 = vpack.c.bf16 %v1835, %v1834
    %v1851 = vpack.c.bf16 %v1837, %v1836
    %v1852 = vpack.c.bf16 %v1839, %v1838
    %s1853 = scalar_lea.vmem [#allocation2], 448
    %v1854 = vld [vmem:[%s1853] sm:$0xf]
    %v1855 = vld [vmem:[%s1853 + $0x4] sm:$0xf]
    %v1856 = vld [vmem:[%s1853 + $0x8] sm:$0xf]
    %v1857 = vld [vmem:[%s1853 + $0xc] sm:$0xf]
    %v1858 = vld [vmem:[%s1853 + $0x10] sm:$0xf]
    %v1859 = vld [vmem:[%s1853 + $0x14] sm:$0xf]
    %v1860 = vld [vmem:[%s1853 + $0x18] sm:$0xf]
    %v1861 = vld [vmem:[%s1853 + $0x1c] sm:$0xf]
    %v1862 = vld [vmem:[%s1853 + $0x20] sm:$0xf]
    %v1863 = vld [vmem:[%s1853 + $0x24] sm:$0xf]
    %v1864 = vld [vmem:[%s1853 + $0x28] sm:$0xf]
    %v1865 = vld [vmem:[%s1853 + $0x2c] sm:$0xf]
    %v1866 = vld [vmem:[%s1853 + $0x30] sm:$0xf]
    %v1867 = vld [vmem:[%s1853 + $0x34] sm:$0xf]
    %v1868 = vld [vmem:[%s1853 + $0x38] sm:$0xf]
    %v1869 = vld [vmem:[%s1853 + $0x3c] sm:$0xf]
    %v1886 = vunpack.c.l.b16 %v1854
    %v1887 = vunpack.c.l.b16 %v1855
    %v1888 = vunpack.c.l.b16 %v1856
    %v1889 = vunpack.c.l.b16 %v1857
    %v1890 = vunpack.c.l.b16 %v1858
    %v1891 = vunpack.c.l.b16 %v1859
    %v1892 = vunpack.c.l.b16 %v1860
    %v1893 = vunpack.c.l.b16 %v1861
    %v1894 = vunpack.c.l.b16 %v1862
    %v1895 = vunpack.c.l.b16 %v1863
    %v1896 = vunpack.c.l.b16 %v1864
    %v1897 = vunpack.c.l.b16 %v1865
    %v1898 = vunpack.c.l.b16 %v1866
    %v1899 = vunpack.c.l.b16 %v1867
    %v1900 = vunpack.c.l.b16 %v1868
    %v1901 = vunpack.c.l.b16 %v1869
    %v1902 = vpack.c.b16 %v1887, %v1886
    %v1903 = vpack.c.b16 %v1889, %v1888
    %v1904 = vpack.c.b16 %v1891, %v1890
    %v1905 = vpack.c.b16 %v1893, %v1892
    %v1906 = vpack.c.b16 %v1895, %v1894
    %v1907 = vpack.c.b16 %v1897, %v1896
    %v1908 = vpack.c.b16 %v1899, %v1898
    %v1909 = vpack.c.b16 %v1901, %v1900
    %1918 = vmatprep.subr.bf16.mxu0 0
    %1919 = vmatpush1.bf16.msra.mxu0 %v1902
    %1920 = vmatprep.subr.bf16.mxu0 0
    %1921 = vmatpush1.bf16.msra.mxu0 %v1903
    %1922 = vmatprep.subr.bf16.mxu0 0
    %1923 = vmatpush1.bf16.msra.mxu0 %v1904
    %1924 = vmatprep.subr.bf16.mxu0 0
    %1925 = vmatpush1.bf16.msra.mxu0 %v1905
    %1926 = vmatprep.subr.bf16.mxu0 0
    %1927 = vmatpush1.bf16.msra.mxu0 %v1906
    %1928 = vmatprep.subr.bf16.mxu0 0
    %1929 = vmatpush1.bf16.msra.mxu0 %v1907
    %1930 = vmatprep.subr.bf16.mxu0 0
    %1931 = vmatpush1.bf16.msra.mxu0 %v1908
    %1932 = vmatprep.subr.bf16.mxu0 0
    %1933 = vmatpush1.bf16.msra.mxu0 %v1909
    %1934 = vmatprep.subr.bf16.mxu0 0
    %1935 = vmatpush1.bf16.msra.mxu0 0
    %1936 = vmatprep.subr.bf16.mxu0 0
    %1937 = vmatpush1.bf16.msra.mxu0 0
    %1938 = vmatprep.subr.bf16.mxu0 0
    %1939 = vmatpush1.bf16.msra.mxu0 0
    %1940 = vmatprep.subr.bf16.mxu0 0
    %1941 = vmatpush1.bf16.msra.mxu0 0
    %1942 = vmatprep.subr.bf16.mxu0 0
    %1943 = vmatpush1.bf16.msra.mxu0 0
    %1944 = vmatprep.subr.bf16.mxu0 0
    %1945 = vmatpush1.bf16.msra.mxu0 0
    %1946 = vmatprep.subr.bf16.mxu0 0
    %1947 = vmatpush1.bf16.msra.mxu0 0
    %1948 = vmatprep.subr.bf16.mxu0 0
    %1949 = vmatpush1.bf16.msra.mxu0 0
    %1950 = vmatprep.mubr.bf16.mxu0 0
    %1951 = vmatmul.mubr.bf16.gmra.mrb[0].mxu0 %v1840
    %v1952 = vpop.f32.mrb[0].mxu0
    %v1953 = vadd.f32 0.0, %v1952
    %v1954 = vpop.f32.mrb[0].mxu0
    %v1955 = vpop.f32.mrb[0].mxu0
    %v1956 = vadd.f32 0.0, %v1955
    %v1957 = vpop.f32.mrb[0].mxu0
    %1958 = vmatprep.mubr.bf16.mxu0 0
    %1959 = vmatmul.mubr.bf16.gmra.mrb[0].mxu0 %v1841
    %v1960 = vpop.f32.mrb[0].mxu0
    %v1961 = vadd.f32 0.0, %v1960
    %v1962 = vpop.f32.mrb[0].mxu0
    %v1963 = vpop.f32.mrb[0].mxu0
    %v1964 = vadd.f32 0.0, %v1963
    %v1965 = vpop.f32.mrb[0].mxu0
    %1966 = vmatprep.mubr.bf16.mxu0 0
    %1967 = vmatmul.mubr.bf16.gmra.mrb[0].mxu0 %v1842
    %v1968 = vpop.f32.mrb[0].mxu0
    %v1969 = vadd.f32 0.0, %v1968
    %v1970 = vpop.f32.mrb[0].mxu0
    %v1971 = vpop.f32.mrb[0].mxu0
    %v1972 = vadd.f32 0.0, %v1971
    %v1973 = vpop.f32.mrb[0].mxu0
    %1974 = vmatprep.mubr.bf16.mxu0 0
    %1975 = vmatmul.mubr.bf16.gmra.mrb[0].mxu0 %v1843
    %v1976 = vpop.f32.mrb[0].mxu0
    %v1977 = vadd.f32 0.0, %v1976
    %v1978 = vpop.f32.mrb[0].mxu0
    %v1979 = vpop.f32.mrb[0].mxu0
    %v1980 = vadd.f32 0.0, %v1979
    %v1981 = vpop.f32.mrb[0].mxu0
    %1982 = vmatprep.mubr.bf16.mxu0 0
    %1983 = vmatmul.mubr.bf16.gmra.mrb[0].mxu0 %v1844
    %v1984 = vpop.f32.mrb[0].mxu0
    %v1985 = vadd.f32 0.0, %v1984
    %v1986 = vpop.f32.mrb[0].mxu0
    %v1987 = vpop.f32.mrb[0].mxu0
    %v1988 = vadd.f32 0.0, %v1987
    %v1989 = vpop.f32.mrb[0].mxu0
    %1990 = vmatprep.mubr.bf16.mxu0 0
    %1991 = vmatmul.mubr.bf16.gmra.mrb[0].mxu0 %v1845
    %v1992 = vpop.f32.mrb[0].mxu0
    %v1993 = vadd.f32 0.0, %v1992
    %v1994 = vpop.f32.mrb[0].mxu0
    %v1995 = vpop.f32.mrb[0].mxu0
    %v1996 = vadd.f32 0.0, %v1995
    %v1997 = vpop.f32.mrb[0].mxu0
    %1998 = vmatprep.mubr.bf16.mxu0 0
    %1999 = vmatmul.mubr.bf16.gmra.mrb[0].mxu0 %v1846
    %v2000 = vpop.f32.mrb[0].mxu0
    %v2001 = vadd.f32 0.0, %v2000
    %v2002 = vpop.f32.mrb[0].mxu0
    %v2003 = vpop.f32.mrb[0].mxu0
    %v2004 = vadd.f32 0.0, %v2003
    %v2005 = vpop.f32.mrb[0].mxu0
    %2006 = vmatprep.mubr.bf16.mxu0 0
    %2007 = vmatmul.mubr.bf16.gmra.mrb[0].mxu0 %v1847
    %v2008 = vpop.f32.mrb[0].mxu0
    %v2009 = vadd.f32 0.0, %v2008
    %v2010 = vpop.f32.mrb[0].mxu0
    %v2011 = vpop.f32.mrb[0].mxu0
    %v2012 = vadd.f32 0.0, %v2011
    %v2013 = vpop.f32.mrb[0].mxu0
    %2014 = vmatprep.mubr.bf16.mxu0 0
    %2015 = vmatmul.mubr.bf16.gmra.mrb[0].mxu0 %v1848
    %v2016 = vpop.f32.mrb[0].mxu0
    %v2017 = vadd.f32 0.0, %v2016
    %v2018 = vpop.f32.mrb[0].mxu0
    %v2019 = vpop.f32.mrb[0].mxu0
    %v2020 = vadd.f32 0.0, %v2019
    %v2021 = vpop.f32.mrb[0].mxu0
    %2022 = vmatprep.mubr.bf16.mxu0 0
    %2023 = vmatmul.mubr.bf16.gmra.mrb[0].mxu0 %v1849
    %v2024 = vpop.f32.mrb[0].mxu0
    %v2025 = vadd.f32 0.0, %v2024
    %v2026 = vpop.f32.mrb[0].mxu0
    %v2027 = vpop.f32.mrb[0].mxu0
    %v2028 = vadd.f32 0.0, %v2027
    %v2029 = vpop.f32.mrb[0].mxu0
    %2030 = vmatprep.mubr.bf16.mxu0 0
    %2031 = vmatmul.mubr.bf16.gmra.mrb[0].mxu0 %v1850
    %v2032 = vpop.f32.mrb[0].mxu0
    %v2033 = vadd.f32 0.0, %v2032
    %v2034 = vpop.f32.mrb[0].mxu0
    %v2035 = vpop.f32.mrb[0].mxu0
    %v2036 = vadd.f32 0.0, %v2035
    %v2037 = vpop.f32.mrb[0].mxu0
    %2038 = vmatprep.mubr.bf16.mxu0 0
    %2039 = vmatmul.mubr.bf16.gmra.mrb[0].mxu0 %v1851
    %v2040 = vpop.f32.mrb[0].mxu0
    %v2041 = vadd.f32 0.0, %v2040
    %v2042 = vpop.f32.mrb[0].mxu0
    %v2043 = vpop.f32.mrb[0].mxu0
    %v2044 = vadd.f32 0.0, %v2043
    %v2045 = vpop.f32.mrb[0].mxu0
    %2046 = vmatprep.mubr.bf16.mxu0 0
    %2047 = vmatmul.mubr.bf16.gmra.mrb[0].mxu0 %v1852
    %v2048 = vpop.f32.mrb[0].mxu0
    %v2049 = vadd.f32 0.0, %v2048
    %v2050 = vpop.f32.mrb[0].mxu0
    %v2051 = vpop.f32.mrb[0].mxu0
    %v2052 = vadd.f32 0.0, %v2051
    %v2053 = vpop.f32.mrb[0].mxu0
    %2054 = vdwg.mxu0
    %v2055 = vmax.f32 %v1953, 0.0
    %v2056 = vmax.f32 %v1956, 0.0
    %v2057 = vmax.f32 %v1961, 0.0
    %v2058 = vmax.f32 %v1964, 0.0
    %v2059 = vmax.f32 %v1969, 0.0
    %v2060 = vmax.f32 %v1972, 0.0
    %v2061 = vmax.f32 %v1977, 0.0
    %v2062 = vmax.f32 %v1980, 0.0
    %v2063 = vmax.f32 %v1985, 0.0
    %v2064 = vmax.f32 %v1988, 0.0
    %v2065 = vmax.f32 %v1993, 0.0
    %v2066 = vmax.f32 %v1996, 0.0
    %v2067 = vmax.f32 %v2001, 0.0
    %v2068 = vmax.f32 %v2004, 0.0
    %v2069 = vmax.f32 %v2009, 0.0
    %v2070 = vmax.f32 %v2012, 0.0
    %v2071 = vmax.f32 %v2017, 0.0
    %v2072 = vmax.f32 %v2020, 0.0
    %v2073 = vmax.f32 %v2025, 0.0
    %v2074 = vmax.f32 %v2028, 0.0
    %v2075 = vmax.f32 %v2033, 0.0
    %v2076 = vmax.f32 %v2036, 0.0
    %v2077 = vmax.f32 %v2041, 0.0
    %v2078 = vmax.f32 %v2044, 0.0
    %v2079 = vmax.f32 %v2049, 0.0
    %v2080 = vmax.f32 %v2052, 0.0
    %v2081 = vpack.c.bf16 %v2056, %v2055
    %v2082 = vpack.c.bf16 %v2058, %v2057
    %v2083 = vpack.c.bf16 %v2060, %v2059
    %v2084 = vpack.c.bf16 %v2062, %v2061
    %v2085 = vpack.c.bf16 %v2064, %v2063
    %v2086 = vpack.c.bf16 %v2066, %v2065
    %v2087 = vpack.c.bf16 %v2068, %v2067
    %v2088 = vpack.c.bf16 %v2070, %v2069
    %v2089 = vpack.c.bf16 %v2072, %v2071
    %v2090 = vpack.c.bf16 %v2074, %v2073
    %v2091 = vpack.c.bf16 %v2076, %v2075
    %v2092 = vpack.c.bf16 %v2078, %v2077
    %v2093 = vpack.c.bf16 %v2080, %v2079
    %s2094 = scalar_lea.vmem [#allocation2], 512
    %v2095 = vld [vmem:[%s2094] sm:$0xf]
    %v2096 = vld [vmem:[%s2094 + $0x4] sm:$0xf]
    %v2097 = vld [vmem:[%s2094 + $0x8] sm:$0xf]
    %v2098 = vld [vmem:[%s2094 + $0xc] sm:$0xf]
    %v2099 = vld [vmem:[%s2094 + $0x10] sm:$0xf]
    %v2100 = vld [vmem:[%s2094 + $0x14] sm:$0xf]
    %v2101 = vld [vmem:[%s2094 + $0x18] sm:$0xf]
    %v2102 = vld [vmem:[%s2094 + $0x1c] sm:$0xf]
    %v2103 = vld [vmem:[%s2094 + $0x20] sm:$0xf]
    %v2104 = vld [vmem:[%s2094 + $0x24] sm:$0xf]
    %v2105 = vld [vmem:[%s2094 + $0x28] sm:$0xf]
    %v2106 = vld [vmem:[%s2094 + $0x2c] sm:$0xf]
    %v2107 = vld [vmem:[%s2094 + $0x30] sm:$0xf]
    %v2108 = vld [vmem:[%s2094 + $0x34] sm:$0xf]
    %v2109 = vld [vmem:[%s2094 + $0x38] sm:$0xf]
    %v2110 = vld [vmem:[%s2094 + $0x3c] sm:$0xf]
    %v2127 = vunpack.c.l.b16 %v2095
    %v2128 = vunpack.c.l.b16 %v2096
    %v2129 = vunpack.c.l.b16 %v2097
    %v2130 = vunpack.c.l.b16 %v2098
    %v2131 = vunpack.c.l.b16 %v2099
    %v2132 = vunpack.c.l.b16 %v2100
    %v2133 = vunpack.c.l.b16 %v2101
    %v2134 = vunpack.c.l.b16 %v2102
    %v2135 = vunpack.c.l.b16 %v2103
    %v2136 = vunpack.c.l.b16 %v2104
    %v2137 = vunpack.c.l.b16 %v2105
    %v2138 = vunpack.c.l.b16 %v2106
    %v2139 = vunpack.c.l.b16 %v2107
    %v2140 = vunpack.c.l.b16 %v2108
    %v2141 = vunpack.c.l.b16 %v2109
    %v2142 = vunpack.c.l.b16 %v2110
    %v2143 = vpack.c.b16 %v2128, %v2127
    %v2144 = vpack.c.b16 %v2130, %v2129
    %v2145 = vpack.c.b16 %v2132, %v2131
    %v2146 = vpack.c.b16 %v2134, %v2133
    %v2147 = vpack.c.b16 %v2136, %v2135
    %v2148 = vpack.c.b16 %v2138, %v2137
    %v2149 = vpack.c.b16 %v2140, %v2139
    %v2150 = vpack.c.b16 %v2142, %v2141
    %2159 = vmatprep.subr.bf16.mxu0 0
    %2160 = vmatpush1.bf16.msra.mxu0 %v2143
    %2161 = vmatprep.subr.bf16.mxu0 0
    %2162 = vmatpush1.bf16.msra.mxu0 %v2144
    %2163 = vmatprep.subr.bf16.mxu0 0
    %2164 = vmatpush1.bf16.msra.mxu0 %v2145
    %2165 = vmatprep.subr.bf16.mxu0 0
    %2166 = vmatpush1.bf16.msra.mxu0 %v2146
    %2167 = vmatprep.subr.bf16.mxu0 0
    %2168 = vmatpush1.bf16.msra.mxu0 %v2147
    %2169 = vmatprep.subr.bf16.mxu0 0
    %2170 = vmatpush1.bf16.msra.mxu0 %v2148
    %2171 = vmatprep.subr.bf16.mxu0 0
    %2172 = vmatpush1.bf16.msra.mxu0 %v2149
    %2173 = vmatprep.subr.bf16.mxu0 0
    %2174 = vmatpush1.bf16.msra.mxu0 %v2150
    %2175 = vmatprep.subr.bf16.mxu0 0
    %2176 = vmatpush1.bf16.msra.mxu0 0
    %2177 = vmatprep.subr.bf16.mxu0 0
    %2178 = vmatpush1.bf16.msra.mxu0 0
    %2179 = vmatprep.subr.bf16.mxu0 0
    %2180 = vmatpush1.bf16.msra.mxu0 0
    %2181 = vmatprep.subr.bf16.mxu0 0
    %2182 = vmatpush1.bf16.msra.mxu0 0
    %2183 = vmatprep.subr.bf16.mxu0 0
    %2184 = vmatpush1.bf16.msra.mxu0 0
    %2185 = vmatprep.subr.bf16.mxu0 0
    %2186 = vmatpush1.bf16.msra.mxu0 0
    %2187 = vmatprep.subr.bf16.mxu0 0
    %2188 = vmatpush1.bf16.msra.mxu0 0
    %2189 = vmatprep.subr.bf16.mxu0 0
    %2190 = vmatpush1.bf16.msra.mxu0 0
    %2191 = vmatprep.mubr.bf16.mxu0 0
    %2192 = vmatmul.mubr.bf16.gmra.mrb[0].mxu0 %v2081
    %v2193 = vpop.f32.mrb[0].mxu0
    %v2194 = vadd.f32 0.0, %v2193
    %v2195 = vpop.f32.mrb[0].mxu0
    %v2196 = vpop.f32.mrb[0].mxu0
    %v2197 = vadd.f32 0.0, %v2196
    %v2198 = vpop.f32.mrb[0].mxu0
    %2199 = vmatprep.mubr.bf16.mxu0 0
    %2200 = vmatmul.mubr.bf16.gmra.mrb[0].mxu0 %v2082
    %v2201 = vpop.f32.mrb[0].mxu0
    %v2202 = vadd.f32 0.0, %v2201
    %v2203 = vpop.f32.mrb[0].mxu0
    %v2204 = vpop.f32.mrb[0].mxu0
    %v2205 = vadd.f32 0.0, %v2204
    %v2206 = vpop.f32.mrb[0].mxu0
    %2207 = vmatprep.mubr.bf16.mxu0 0
    %2208 = vmatmul.mubr.bf16.gmra.mrb[0].mxu0 %v2083
    %v2209 = vpop.f32.mrb[0].mxu0
    %v2210 = vadd.f32 0.0, %v2209
    %v2211 = vpop.f32.mrb[0].mxu0
    %v2212 = vpop.f32.mrb[0].mxu0
    %v2213 = vadd.f32 0.0, %v2212
    %v2214 = vpop.f32.mrb[0].mxu0
    %2215 = vmatprep.mubr.bf16.mxu0 0
    %2216 = vmatmul.mubr.bf16.gmra.mrb[0].mxu0 %v2084
    %v2217 = vpop.f32.mrb[0].mxu0
    %v2218 = vadd.f32 0.0, %v2217
    %v2219 = vpop.f32.mrb[0].mxu0
    %v2220 = vpop.f32.mrb[0].mxu0
    %v2221 = vadd.f32 0.0, %v2220
    %v2222 = vpop.f32.mrb[0].mxu0
    %2223 = vmatprep.mubr.bf16.mxu0 0
    %2224 = vmatmul.mubr.bf16.gmra.mrb[0].mxu0 %v2085
    %v2225 = vpop.f32.mrb[0].mxu0
    %v2226 = vadd.f32 0.0, %v2225
    %v2227 = vpop.f32.mrb[0].mxu0
    %v2228 = vpop.f32.mrb[0].mxu0
    %v2229 = vadd.f32 0.0, %v2228
    %v2230 = vpop.f32.mrb[0].mxu0
    %2231 = vmatprep.mubr.bf16.mxu0 0
    %2232 = vmatmul.mubr.bf16.gmra.mrb[0].mxu0 %v2086
    %v2233 = vpop.f32.mrb[0].mxu0
    %v2234 = vadd.f32 0.0, %v2233
    %v2235 = vpop.f32.mrb[0].mxu0
    %v2236 = vpop.f32.mrb[0].mxu0
    %v2237 = vadd.f32 0.0, %v2236
    %v2238 = vpop.f32.mrb[0].mxu0
    %2239 = vmatprep.mubr.bf16.mxu0 0
    %2240 = vmatmul.mubr.bf16.gmra.mrb[0].mxu0 %v2087
    %v2241 = vpop.f32.mrb[0].mxu0
    %v2242 = vadd.f32 0.0, %v2241
    %v2243 = vpop.f32.mrb[0].mxu0
    %v2244 = vpop.f32.mrb[0].mxu0
    %v2245 = vadd.f32 0.0, %v2244
    %v2246 = vpop.f32.mrb[0].mxu0
    %2247 = vmatprep.mubr.bf16.mxu0 0
    %2248 = vmatmul.mubr.bf16.gmra.mrb[0].mxu0 %v2088
    %v2249 = vpop.f32.mrb[0].mxu0
    %v2250 = vadd.f32 0.0, %v2249
    %v2251 = vpop.f32.mrb[0].mxu0
    %v2252 = vpop.f32.mrb[0].mxu0
    %v2253 = vadd.f32 0.0, %v2252
    %v2254 = vpop.f32.mrb[0].mxu0
    %2255 = vmatprep.mubr.bf16.mxu0 0
    %2256 = vmatmul.mubr.bf16.gmra.mrb[0].mxu0 %v2089
    %v2257 = vpop.f32.mrb[0].mxu0
    %v2258 = vadd.f32 0.0, %v2257
    %v2259 = vpop.f32.mrb[0].mxu0
    %v2260 = vpop.f32.mrb[0].mxu0
    %v2261 = vadd.f32 0.0, %v2260
    %v2262 = vpop.f32.mrb[0].mxu0
    %2263 = vmatprep.mubr.bf16.mxu0 0
    %2264 = vmatmul.mubr.bf16.gmra.mrb[0].mxu0 %v2090
    %v2265 = vpop.f32.mrb[0].mxu0
    %v2266 = vadd.f32 0.0, %v2265
    %v2267 = vpop.f32.mrb[0].mxu0
    %v2268 = vpop.f32.mrb[0].mxu0
    %v2269 = vadd.f32 0.0, %v2268
    %v2270 = vpop.f32.mrb[0].mxu0
    %2271 = vmatprep.mubr.bf16.mxu0 0
    %2272 = vmatmul.mubr.bf16.gmra.mrb[0].mxu0 %v2091
    %v2273 = vpop.f32.mrb[0].mxu0
    %v2274 = vadd.f32 0.0, %v2273
    %v2275 = vpop.f32.mrb[0].mxu0
    %v2276 = vpop.f32.mrb[0].mxu0
    %v2277 = vadd.f32 0.0, %v2276
    %v2278 = vpop.f32.mrb[0].mxu0
    %2279 = vmatprep.mubr.bf16.mxu0 0
    %2280 = vmatmul.mubr.bf16.gmra.mrb[0].mxu0 %v2092
    %v2281 = vpop.f32.mrb[0].mxu0
    %v2282 = vadd.f32 0.0, %v2281
    %v2283 = vpop.f32.mrb[0].mxu0
    %v2284 = vpop.f32.mrb[0].mxu0
    %v2285 = vadd.f32 0.0, %v2284
    %v2286 = vpop.f32.mrb[0].mxu0
    %2287 = vmatprep.mubr.bf16.mxu0 0
    %2288 = vmatmul.mubr.bf16.gmra.mrb[0].mxu0 %v2093
    %v2289 = vpop.f32.mrb[0].mxu0
    %v2290 = vadd.f32 0.0, %v2289
    %v2291 = vpop.f32.mrb[0].mxu0
    %v2292 = vpop.f32.mrb[0].mxu0
    %v2293 = vadd.f32 0.0, %v2292
    %v2294 = vpop.f32.mrb[0].mxu0
    %2295 = vdwg.mxu0
    %v2296 = vmax.f32 %v2194, 0.0
    %v2297 = vmax.f32 %v2197, 0.0
    %v2298 = vmax.f32 %v2202, 0.0
    %v2299 = vmax.f32 %v2205, 0.0
    %v2300 = vmax.f32 %v2210, 0.0
    %v2301 = vmax.f32 %v2213, 0.0
    %v2302 = vmax.f32 %v2218, 0.0
    %v2303 = vmax.f32 %v2221, 0.0
    %v2304 = vmax.f32 %v2226, 0.0
    %v2305 = vmax.f32 %v2229, 0.0
    %v2306 = vmax.f32 %v2234, 0.0
    %v2307 = vmax.f32 %v2237, 0.0
    %v2308 = vmax.f32 %v2242, 0.0
    %v2309 = vmax.f32 %v2245, 0.0
    %v2310 = vmax.f32 %v2250, 0.0
    %v2311 = vmax.f32 %v2253, 0.0
    %v2312 = vmax.f32 %v2258, 0.0
    %v2313 = vmax.f32 %v2261, 0.0
    %v2314 = vmax.f32 %v2266, 0.0
    %v2315 = vmax.f32 %v2269, 0.0
    %v2316 = vmax.f32 %v2274, 0.0
    %v2317 = vmax.f32 %v2277, 0.0
    %v2318 = vmax.f32 %v2282, 0.0
    %v2319 = vmax.f32 %v2285, 0.0
    %v2320 = vmax.f32 %v2290, 0.0
    %v2321 = vmax.f32 %v2293, 0.0
    %v2322 = vpack.c.bf16 %v2297, %v2296
    %v2323 = vpack.c.bf16 %v2299, %v2298
    %v2324 = vpack.c.bf16 %v2301, %v2300
    %v2325 = vpack.c.bf16 %v2303, %v2302
    %v2326 = vpack.c.bf16 %v2305, %v2304
    %v2327 = vpack.c.bf16 %v2307, %v2306
    %v2328 = vpack.c.bf16 %v2309, %v2308
    %v2329 = vpack.c.bf16 %v2311, %v2310
    %v2330 = vpack.c.bf16 %v2313, %v2312
    %v2331 = vpack.c.bf16 %v2315, %v2314
    %v2332 = vpack.c.bf16 %v2317, %v2316
    %v2333 = vpack.c.bf16 %v2319, %v2318
    %v2334 = vpack.c.bf16 %v2321, %v2320
    %s2335 = scalar_lea.vmem [#allocation2], 576
    %v2336 = vld [vmem:[%s2335] sm:$0xf]
    %v2337 = vld [vmem:[%s2335 + $0x4] sm:$0xf]
    %v2338 = vld [vmem:[%s2335 + $0x8] sm:$0xf]
    %v2339 = vld [vmem:[%s2335 + $0xc] sm:$0xf]
    %v2340 = vld [vmem:[%s2335 + $0x10] sm:$0xf]
    %v2341 = vld [vmem:[%s2335 + $0x14] sm:$0xf]
    %v2342 = vld [vmem:[%s2335 + $0x18] sm:$0xf]
    %v2343 = vld [vmem:[%s2335 + $0x1c] sm:$0xf]
    %v2344 = vld [vmem:[%s2335 + $0x20] sm:$0xf]
    %v2345 = vld [vmem:[%s2335 + $0x24] sm:$0xf]
    %v2346 = vld [vmem:[%s2335 + $0x28] sm:$0xf]
    %v2347 = vld [vmem:[%s2335 + $0x2c] sm:$0xf]
    %v2348 = vld [vmem:[%s2335 + $0x30] sm:$0xf]
    %v2349 = vld [vmem:[%s2335 + $0x34] sm:$0xf]
    %v2350 = vld [vmem:[%s2335 + $0x38] sm:$0xf]
    %v2351 = vld [vmem:[%s2335 + $0x3c] sm:$0xf]
    %v2368 = vunpack.c.l.b16 %v2336
    %v2369 = vunpack.c.l.b16 %v2337
    %v2370 = vunpack.c.l.b16 %v2338
    %v2371 = vunpack.c.l.b16 %v2339
    %v2372 = vunpack.c.l.b16 %v2340
    %v2373 = vunpack.c.l.b16 %v2341
    %v2374 = vunpack.c.l.b16 %v2342
    %v2375 = vunpack.c.l.b16 %v2343
    %v2376 = vunpack.c.l.b16 %v2344
    %v2377 = vunpack.c.l.b16 %v2345
    %v2378 = vunpack.c.l.b16 %v2346
    %v2379 = vunpack.c.l.b16 %v2347
    %v2380 = vunpack.c.l.b16 %v2348
    %v2381 = vunpack.c.l.b16 %v2349
    %v2382 = vunpack.c.l.b16 %v2350
    %v2383 = vunpack.c.l.b16 %v2351
    %v2384 = vpack.c.b16 %v2369, %v2368
    %v2385 = vpack.c.b16 %v2371, %v2370
    %v2386 = vpack.c.b16 %v2373, %v2372
    %v2387 = vpack.c.b16 %v2375, %v2374
    %v2388 = vpack.c.b16 %v2377, %v2376
    %v2389 = vpack.c.b16 %v2379, %v2378
    %v2390 = vpack.c.b16 %v2381, %v2380
    %v2391 = vpack.c.b16 %v2383, %v2382
    %2400 = vmatprep.subr.bf16.mxu0 0
    %2401 = vmatpush1.bf16.msra.mxu0 %v2384
    %2402 = vmatprep.subr.bf16.mxu0 0
    %2403 = vmatpush1.bf16.msra.mxu0 %v2385
    %2404 = vmatprep.subr.bf16.mxu0 0
    %2405 = vmatpush1.bf16.msra.mxu0 %v2386
    %2406 = vmatprep.subr.bf16.mxu0 0
    %2407 = vmatpush1.bf16.msra.mxu0 %v2387
    %2408 = vmatprep.subr.bf16.mxu0 0
    %2409 = vmatpush1.bf16.msra.mxu0 %v2388
    %2410 = vmatprep.subr.bf16.mxu0 0
    %2411 = vmatpush1.bf16.msra.mxu0 %v2389
    %2412 = vmatprep.subr.bf16.mxu0 0
    %2413 = vmatpush1.bf16.msra.mxu0 %v2390
    %2414 = vmatprep.subr.bf16.mxu0 0
    %2415 = vmatpush1.bf16.msra.mxu0 %v2391
    %2416 = vmatprep.subr.bf16.mxu0 0
    %2417 = vmatpush1.bf16.msra.mxu0 0
    %2418 = vmatprep.subr.bf16.mxu0 0
    %2419 = vmatpush1.bf16.msra.mxu0 0
    %2420 = vmatprep.subr.bf16.mxu0 0
    %2421 = vmatpush1.bf16.msra.mxu0 0
    %2422 = vmatprep.subr.bf16.mxu0 0
    %2423 = vmatpush1.bf16.msra.mxu0 0
    %2424 = vmatprep.subr.bf16.mxu0 0
    %2425 = vmatpush1.bf16.msra.mxu0 0
    %2426 = vmatprep.subr.bf16.mxu0 0
    %2427 = vmatpush1.bf16.msra.mxu0 0
    %2428 = vmatprep.subr.bf16.mxu0 0
    %2429 = vmatpush1.bf16.msra.mxu0 0
    %2430 = vmatprep.subr.bf16.mxu0 0
    %2431 = vmatpush1.bf16.msra.mxu0 0
    %2432 = vmatprep.mubr.bf16.mxu0 0
    %2433 = vmatmul.mubr.bf16.gmra.mrb[0].mxu0 %v2322
    %v2434 = vpop.f32.mrb[0].mxu0
    %v2435 = vadd.f32 0.0, %v2434
    %v2436 = vpop.f32.mrb[0].mxu0
    %v2437 = vpop.f32.mrb[0].mxu0
    %v2438 = vadd.f32 0.0, %v2437
    %v2439 = vpop.f32.mrb[0].mxu0
    %2440 = vmatprep.mubr.bf16.mxu0 0
    %2441 = vmatmul.mubr.bf16.gmra.mrb[0].mxu0 %v2323
    %v2442 = vpop.f32.mrb[0].mxu0
    %v2443 = vadd.f32 0.0, %v2442
    %v2444 = vpop.f32.mrb[0].mxu0
    %v2445 = vpop.f32.mrb[0].mxu0
    %v2446 = vadd.f32 0.0, %v2445
    %v2447 = vpop.f32.mrb[0].mxu0
    %2448 = vmatprep.mubr.bf16.mxu0 0
    %2449 = vmatmul.mubr.bf16.gmra.mrb[0].mxu0 %v2324
    %v2450 = vpop.f32.mrb[0].mxu0
    %v2451 = vadd.f32 0.0, %v2450
    %v2452 = vpop.f32.mrb[0].mxu0
    %v2453 = vpop.f32.mrb[0].mxu0
    %v2454 = vadd.f32 0.0, %v2453
    %v2455 = vpop.f32.mrb[0].mxu0
    %2456 = vmatprep.mubr.bf16.mxu0 0
    %2457 = vmatmul.mubr.bf16.gmra.mrb[0].mxu0 %v2325
    %v2458 = vpop.f32.mrb[0].mxu0
    %v2459 = vadd.f32 0.0, %v2458
    %v2460 = vpop.f32.mrb[0].mxu0
    %v2461 = vpop.f32.mrb[0].mxu0
    %v2462 = vadd.f32 0.0, %v2461
    %v2463 = vpop.f32.mrb[0].mxu0
    %2464 = vmatprep.mubr.bf16.mxu0 0
    %2465 = vmatmul.mubr.bf16.gmra.mrb[0].mxu0 %v2326
    %v2466 = vpop.f32.mrb[0].mxu0
    %v2467 = vadd.f32 0.0, %v2466
    %v2468 = vpop.f32.mrb[0].mxu0
    %v2469 = vpop.f32.mrb[0].mxu0
    %v2470 = vadd.f32 0.0, %v2469
    %v2471 = vpop.f32.mrb[0].mxu0
    %2472 = vmatprep.mubr.bf16.mxu0 0
    %2473 = vmatmul.mubr.bf16.gmra.mrb[0].mxu0 %v2327
    %v2474 = vpop.f32.mrb[0].mxu0
    %v2475 = vadd.f32 0.0, %v2474
    %v2476 = vpop.f32.mrb[0].mxu0
    %v2477 = vpop.f32.mrb[0].mxu0
    %v2478 = vadd.f32 0.0, %v2477
    %v2479 = vpop.f32.mrb[0].mxu0
    %2480 = vmatprep.mubr.bf16.mxu0 0
    %2481 = vmatmul.mubr.bf16.gmra.mrb[0].mxu0 %v2328
    %v2482 = vpop.f32.mrb[0].mxu0
    %v2483 = vadd.f32 0.0, %v2482
    %v2484 = vpop.f32.mrb[0].mxu0
    %v2485 = vpop.f32.mrb[0].mxu0
    %v2486 = vadd.f32 0.0, %v2485
    %v2487 = vpop.f32.mrb[0].mxu0
    %2488 = vmatprep.mubr.bf16.mxu0 0
    %2489 = vmatmul.mubr.bf16.gmra.mrb[0].mxu0 %v2329
    %v2490 = vpop.f32.mrb[0].mxu0
    %v2491 = vadd.f32 0.0, %v2490
    %v2492 = vpop.f32.mrb[0].mxu0
    %v2493 = vpop.f32.mrb[0].mxu0
    %v2494 = vadd.f32 0.0, %v2493
    %v2495 = vpop.f32.mrb[0].mxu0
    %2496 = vmatprep.mubr.bf16.mxu0 0
    %2497 = vmatmul.mubr.bf16.gmra.mrb[0].mxu0 %v2330
    %v2498 = vpop.f32.mrb[0].mxu0
    %v2499 = vadd.f32 0.0, %v2498
    %v2500 = vpop.f32.mrb[0].mxu0
    %v2501 = vpop.f32.mrb[0].mxu0
    %v2502 = vadd.f32 0.0, %v2501
    %v2503 = vpop.f32.mrb[0].mxu0
    %2504 = vmatprep.mubr.bf16.mxu0 0
    %2505 = vmatmul.mubr.bf16.gmra.mrb[0].mxu0 %v2331
    %v2506 = vpop.f32.mrb[0].mxu0
    %v2507 = vadd.f32 0.0, %v2506
    %v2508 = vpop.f32.mrb[0].mxu0
    %v2509 = vpop.f32.mrb[0].mxu0
    %v2510 = vadd.f32 0.0, %v2509
    %v2511 = vpop.f32.mrb[0].mxu0
    %2512 = vmatprep.mubr.bf16.mxu0 0
    %2513 = vmatmul.mubr.bf16.gmra.mrb[0].mxu0 %v2332
    %v2514 = vpop.f32.mrb[0].mxu0
    %v2515 = vadd.f32 0.0, %v2514
    %v2516 = vpop.f32.mrb[0].mxu0
    %v2517 = vpop.f32.mrb[0].mxu0
    %v2518 = vadd.f32 0.0, %v2517
    %v2519 = vpop.f32.mrb[0].mxu0
    %2520 = vmatprep.mubr.bf16.mxu0 0
    %2521 = vmatmul.mubr.bf16.gmra.mrb[0].mxu0 %v2333
    %v2522 = vpop.f32.mrb[0].mxu0
    %v2523 = vadd.f32 0.0, %v2522
    %v2524 = vpop.f32.mrb[0].mxu0
    %v2525 = vpop.f32.mrb[0].mxu0
    %v2526 = vadd.f32 0.0, %v2525
    %v2527 = vpop.f32.mrb[0].mxu0
    %2528 = vmatprep.mubr.bf16.mxu0 0
    %2529 = vmatmul.mubr.bf16.gmra.mrb[0].mxu0 %v2334
    %v2530 = vpop.f32.mrb[0].mxu0
    %v2531 = vadd.f32 0.0, %v2530
    %v2532 = vpop.f32.mrb[0].mxu0
    %v2533 = vpop.f32.mrb[0].mxu0
    %v2534 = vadd.f32 0.0, %v2533
    %v2535 = vpop.f32.mrb[0].mxu0
    %2536 = vdwg.mxu0
    %v2537 = vmax.f32 %v2435, 0.0
    %v2538 = vmax.f32 %v2438, 0.0
    %v2539 = vmax.f32 %v2443, 0.0
    %v2540 = vmax.f32 %v2446, 0.0
    %v2541 = vmax.f32 %v2451, 0.0
    %v2542 = vmax.f32 %v2454, 0.0
    %v2543 = vmax.f32 %v2459, 0.0
    %v2544 = vmax.f32 %v2462, 0.0
    %v2545 = vmax.f32 %v2467, 0.0
    %v2546 = vmax.f32 %v2470, 0.0
    %v2547 = vmax.f32 %v2475, 0.0
    %v2548 = vmax.f32 %v2478, 0.0
    %v2549 = vmax.f32 %v2483, 0.0
    %v2550 = vmax.f32 %v2486, 0.0
    %v2551 = vmax.f32 %v2491, 0.0
    %v2552 = vmax.f32 %v2494, 0.0
    %v2553 = vmax.f32 %v2499, 0.0
    %v2554 = vmax.f32 %v2502, 0.0
    %v2555 = vmax.f32 %v2507, 0.0
    %v2556 = vmax.f32 %v2510, 0.0
    %v2557 = vmax.f32 %v2515, 0.0
    %v2558 = vmax.f32 %v2518, 0.0
    %v2559 = vmax.f32 %v2523, 0.0
    %v2560 = vmax.f32 %v2526, 0.0
    %v2561 = vmax.f32 %v2531, 0.0
    %v2562 = vmax.f32 %v2534, 0.0
    %v2563 = vpack.c.bf16 %v2538, %v2537
    %v2564 = vpack.c.bf16 %v2540, %v2539
    %v2565 = vpack.c.bf16 %v2542, %v2541
    %v2566 = vpack.c.bf16 %v2544, %v2543
    %v2567 = vpack.c.bf16 %v2546, %v2545
    %v2568 = vpack.c.bf16 %v2548, %v2547
    %v2569 = vpack.c.bf16 %v2550, %v2549
    %v2570 = vpack.c.bf16 %v2552, %v2551
    %v2571 = vpack.c.bf16 %v2554, %v2553
    %v2572 = vpack.c.bf16 %v2556, %v2555
    %v2573 = vpack.c.bf16 %v2558, %v2557
    %v2574 = vpack.c.bf16 %v2560, %v2559
    %v2575 = vpack.c.bf16 %v2562, %v2561
    %s2576 = scalar_lea.vmem [#allocation2], 640
    %v2577 = vld [vmem:[%s2576] sm:$0xf]
    %v2578 = vld [vmem:[%s2576 + $0x4] sm:$0xf]
    %v2579 = vld [vmem:[%s2576 + $0x8] sm:$0xf]
    %v2580 = vld [vmem:[%s2576 + $0xc] sm:$0xf]
    %v2581 = vld [vmem:[%s2576 + $0x10] sm:$0xf]
    %v2582 = vld [vmem:[%s2576 + $0x14] sm:$0xf]
    %v2583 = vld [vmem:[%s2576 + $0x18] sm:$0xf]
    %v2584 = vld [vmem:[%s2576 + $0x1c] sm:$0xf]
    %v2585 = vld [vmem:[%s2576 + $0x20] sm:$0xf]
    %v2586 = vld [vmem:[%s2576 + $0x24] sm:$0xf]
    %v2587 = vld [vmem:[%s2576 + $0x28] sm:$0xf]
    %v2588 = vld [vmem:[%s2576 + $0x2c] sm:$0xf]
    %v2589 = vld [vmem:[%s2576 + $0x30] sm:$0xf]
    %v2590 = vld [vmem:[%s2576 + $0x34] sm:$0xf]
    %v2591 = vld [vmem:[%s2576 + $0x38] sm:$0xf]
    %v2592 = vld [vmem:[%s2576 + $0x3c] sm:$0xf]
    %v2609 = vunpack.c.l.b16 %v2577
    %v2610 = vunpack.c.l.b16 %v2578
    %v2611 = vunpack.c.l.b16 %v2579
    %v2612 = vunpack.c.l.b16 %v2580
    %v2613 = vunpack.c.l.b16 %v2581
    %v2614 = vunpack.c.l.b16 %v2582
    %v2615 = vunpack.c.l.b16 %v2583
    %v2616 = vunpack.c.l.b16 %v2584
    %v2617 = vunpack.c.l.b16 %v2585
    %v2618 = vunpack.c.l.b16 %v2586
    %v2619 = vunpack.c.l.b16 %v2587
    %v2620 = vunpack.c.l.b16 %v2588
    %v2621 = vunpack.c.l.b16 %v2589
    %v2622 = vunpack.c.l.b16 %v2590
    %v2623 = vunpack.c.l.b16 %v2591
    %v2624 = vunpack.c.l.b16 %v2592
    %v2625 = vpack.c.b16 %v2610, %v2609
    %v2626 = vpack.c.b16 %v2612, %v2611
    %v2627 = vpack.c.b16 %v2614, %v2613
    %v2628 = vpack.c.b16 %v2616, %v2615
    %v2629 = vpack.c.b16 %v2618, %v2617
    %v2630 = vpack.c.b16 %v2620, %v2619
    %v2631 = vpack.c.b16 %v2622, %v2621
    %v2632 = vpack.c.b16 %v2624, %v2623
    %2641 = vmatprep.subr.bf16.mxu0 0
    %2642 = vmatpush1.bf16.msra.mxu0 %v2625
    %2643 = vmatprep.subr.bf16.mxu0 0
    %2644 = vmatpush1.bf16.msra.mxu0 %v2626
    %2645 = vmatprep.subr.bf16.mxu0 0
    %2646 = vmatpush1.bf16.msra.mxu0 %v2627
    %2647 = vmatprep.subr.bf16.mxu0 0
    %2648 = vmatpush1.bf16.msra.mxu0 %v2628
    %2649 = vmatprep.subr.bf16.mxu0 0
    %2650 = vmatpush1.bf16.msra.mxu0 %v2629
    %2651 = vmatprep.subr.bf16.mxu0 0
    %2652 = vmatpush1.bf16.msra.mxu0 %v2630
    %2653 = vmatprep.subr.bf16.mxu0 0
    %2654 = vmatpush1.bf16.msra.mxu0 %v2631
    %2655 = vmatprep.subr.bf16.mxu0 0
    %2656 = vmatpush1.bf16.msra.mxu0 %v2632
    %2657 = vmatprep.subr.bf16.mxu0 0
    %2658 = vmatpush1.bf16.msra.mxu0 0
    %2659 = vmatprep.subr.bf16.mxu0 0
    %2660 = vmatpush1.bf16.msra.mxu0 0
    %2661 = vmatprep.subr.bf16.mxu0 0
    %2662 = vmatpush1.bf16.msra.mxu0 0
    %2663 = vmatprep.subr.bf16.mxu0 0
    %2664 = vmatpush1.bf16.msra.mxu0 0
    %2665 = vmatprep.subr.bf16.mxu0 0
    %2666 = vmatpush1.bf16.msra.mxu0 0
    %2667 = vmatprep.subr.bf16.mxu0 0
    %2668 = vmatpush1.bf16.msra.mxu0 0
    %2669 = vmatprep.subr.bf16.mxu0 0
    %2670 = vmatpush1.bf16.msra.mxu0 0
    %2671 = vmatprep.subr.bf16.mxu0 0
    %2672 = vmatpush1.bf16.msra.mxu0 0
    %2673 = vmatprep.mubr.bf16.mxu0 0
    %2674 = vmatmul.mubr.bf16.gmra.mrb[0].mxu0 %v2563
    %v2675 = vpop.f32.mrb[0].mxu0
    %v2676 = vadd.f32 0.0, %v2675
    %v2677 = vpop.f32.mrb[0].mxu0
    %v2678 = vpop.f32.mrb[0].mxu0
    %v2679 = vadd.f32 0.0, %v2678
    %v2680 = vpop.f32.mrb[0].mxu0
    %2681 = vmatprep.mubr.bf16.mxu0 0
    %2682 = vmatmul.mubr.bf16.gmra.mrb[0].mxu0 %v2564
    %v2683 = vpop.f32.mrb[0].mxu0
    %v2684 = vadd.f32 0.0, %v2683
    %v2685 = vpop.f32.mrb[0].mxu0
    %v2686 = vpop.f32.mrb[0].mxu0
    %v2687 = vadd.f32 0.0, %v2686
    %v2688 = vpop.f32.mrb[0].mxu0
    %2689 = vmatprep.mubr.bf16.mxu0 0
    %2690 = vmatmul.mubr.bf16.gmra.mrb[0].mxu0 %v2565
    %v2691 = vpop.f32.mrb[0].mxu0
    %v2692 = vadd.f32 0.0, %v2691
    %v2693 = vpop.f32.mrb[0].mxu0
    %v2694 = vpop.f32.mrb[0].mxu0
    %v2695 = vadd.f32 0.0, %v2694
    %v2696 = vpop.f32.mrb[0].mxu0
    %2697 = vmatprep.mubr.bf16.mxu0 0
    %2698 = vmatmul.mubr.bf16.gmra.mrb[0].mxu0 %v2566
    %v2699 = vpop.f32.mrb[0].mxu0
    %v2700 = vadd.f32 0.0, %v2699
    %v2701 = vpop.f32.mrb[0].mxu0
    %v2702 = vpop.f32.mrb[0].mxu0
    %v2703 = vadd.f32 0.0, %v2702
    %v2704 = vpop.f32.mrb[0].mxu0
    %2705 = vmatprep.mubr.bf16.mxu0 0
    %2706 = vmatmul.mubr.bf16.gmra.mrb[0].mxu0 %v2567
    %v2707 = vpop.f32.mrb[0].mxu0
    %v2708 = vadd.f32 0.0, %v2707
    %v2709 = vpop.f32.mrb[0].mxu0
    %v2710 = vpop.f32.mrb[0].mxu0
    %v2711 = vadd.f32 0.0, %v2710
    %v2712 = vpop.f32.mrb[0].mxu0
    %2713 = vmatprep.mubr.bf16.mxu0 0
    %2714 = vmatmul.mubr.bf16.gmra.mrb[0].mxu0 %v2568
    %v2715 = vpop.f32.mrb[0].mxu0
    %v2716 = vadd.f32 0.0, %v2715
    %v2717 = vpop.f32.mrb[0].mxu0
    %v2718 = vpop.f32.mrb[0].mxu0
    %v2719 = vadd.f32 0.0, %v2718
    %v2720 = vpop.f32.mrb[0].mxu0
    %2721 = vmatprep.mubr.bf16.mxu0 0
    %2722 = vmatmul.mubr.bf16.gmra.mrb[0].mxu0 %v2569
    %v2723 = vpop.f32.mrb[0].mxu0
    %v2724 = vadd.f32 0.0, %v2723
    %v2725 = vpop.f32.mrb[0].mxu0
    %v2726 = vpop.f32.mrb[0].mxu0
    %v2727 = vadd.f32 0.0, %v2726
    %v2728 = vpop.f32.mrb[0].mxu0
    %2729 = vmatprep.mubr.bf16.mxu0 0
    %2730 = vmatmul.mubr.bf16.gmra.mrb[0].mxu0 %v2570
    %v2731 = vpop.f32.mrb[0].mxu0
    %v2732 = vadd.f32 0.0, %v2731
    %v2733 = vpop.f32.mrb[0].mxu0
    %v2734 = vpop.f32.mrb[0].mxu0
    %v2735 = vadd.f32 0.0, %v2734
    %v2736 = vpop.f32.mrb[0].mxu0
    %2737 = vmatprep.mubr.bf16.mxu0 0
    %2738 = vmatmul.mubr.bf16.gmra.mrb[0].mxu0 %v2571
    %v2739 = vpop.f32.mrb[0].mxu0
    %v2740 = vadd.f32 0.0, %v2739
    %v2741 = vpop.f32.mrb[0].mxu0
    %v2742 = vpop.f32.mrb[0].mxu0
    %v2743 = vadd.f32 0.0, %v2742
    %v2744 = vpop.f32.mrb[0].mxu0
    %2745 = vmatprep.mubr.bf16.mxu0 0
    %2746 = vmatmul.mubr.bf16.gmra.mrb[0].mxu0 %v2572
    %v2747 = vpop.f32.mrb[0].mxu0
    %v2748 = vadd.f32 0.0, %v2747
    %v2749 = vpop.f32.mrb[0].mxu0
    %v2750 = vpop.f32.mrb[0].mxu0
    %v2751 = vadd.f32 0.0, %v2750
    %v2752 = vpop.f32.mrb[0].mxu0
    %2753 = vmatprep.mubr.bf16.mxu0 0
    %2754 = vmatmul.mubr.bf16.gmra.mrb[0].mxu0 %v2573
    %v2755 = vpop.f32.mrb[0].mxu0
    %v2756 = vadd.f32 0.0, %v2755
    %v2757 = vpop.f32.mrb[0].mxu0
    %v2758 = vpop.f32.mrb[0].mxu0
    %v2759 = vadd.f32 0.0, %v2758
    %v2760 = vpop.f32.mrb[0].mxu0
    %2761 = vmatprep.mubr.bf16.mxu0 0
    %2762 = vmatmul.mubr.bf16.gmra.mrb[0].mxu0 %v2574
    %v2763 = vpop.f32.mrb[0].mxu0
    %v2764 = vadd.f32 0.0, %v2763
    %v2765 = vpop.f32.mrb[0].mxu0
    %v2766 = vpop.f32.mrb[0].mxu0
    %v2767 = vadd.f32 0.0, %v2766
    %v2768 = vpop.f32.mrb[0].mxu0
    %2769 = vmatprep.mubr.bf16.mxu0 0
    %2770 = vmatmul.mubr.bf16.gmra.mrb[0].mxu0 %v2575
    %v2771 = vpop.f32.mrb[0].mxu0
    %v2772 = vadd.f32 0.0, %v2771
    %v2773 = vpop.f32.mrb[0].mxu0
    %v2774 = vpop.f32.mrb[0].mxu0
    %v2775 = vadd.f32 0.0, %v2774
    %v2776 = vpop.f32.mrb[0].mxu0
    %2777 = vdwg.mxu0
    %v2778 = vpack.c.bf16 %v2679, %v2676
    %v2779 = vpack.c.bf16 %v2687, %v2684
    %v2780 = vpack.c.bf16 %v2695, %v2692
    %v2781 = vpack.c.bf16 %v2703, %v2700
    %v2782 = vpack.c.bf16 %v2711, %v2708
    %v2783 = vpack.c.bf16 %v2719, %v2716
    %v2784 = vpack.c.bf16 %v2727, %v2724
    %v2785 = vpack.c.bf16 %v2735, %v2732
    %v2786 = vpack.c.bf16 %v2743, %v2740
    %v2787 = vpack.c.bf16 %v2751, %v2748
    %v2788 = vpack.c.bf16 %v2759, %v2756
    %v2789 = vpack.c.bf16 %v2767, %v2764
    %v2790 = vpack.c.bf16 %v2775, %v2772
    %v2804 = vunpack.c.l.b16 %v2778
    %v2805 = vunpack.c.h.b16 %v2778
    %v2806 = vunpack.c.l.b16 %v2779
    %v2807 = vunpack.c.h.b16 %v2779
    %v2808 = vunpack.c.l.b16 %v2780
    %v2809 = vunpack.c.h.b16 %v2780
    %v2810 = vunpack.c.l.b16 %v2781
    %v2811 = vunpack.c.h.b16 %v2781
    %v2812 = vunpack.c.l.b16 %v2782
    %v2813 = vunpack.c.h.b16 %v2782
    %v2814 = vunpack.c.l.b16 %v2783
    %v2815 = vunpack.c.h.b16 %v2783
    %v2816 = vunpack.c.l.b16 %v2784
    %v2817 = vunpack.c.h.b16 %v2784
    %v2818 = vunpack.c.l.b16 %v2785
    %v2819 = vunpack.c.h.b16 %v2785
    %v2820 = vunpack.c.l.b16 %v2786
    %v2821 = vunpack.c.h.b16 %v2786
    %v2822 = vunpack.c.l.b16 %v2787
    %v2823 = vunpack.c.h.b16 %v2787
    %v2824 = vunpack.c.l.b16 %v2788
    %v2825 = vunpack.c.h.b16 %v2788
    %v2826 = vunpack.c.l.b16 %v2789
    %v2827 = vunpack.c.h.b16 %v2789
    %v2828 = vunpack.c.l.b16 %v2790
    %v2829 = vunpack.c.h.b16 %v2790
    %v2830 = vpack.c.b16 %v2804, %v2804
    %v2831 = vpack.c.b16 %v2805, %v2805
    %v2832 = vpack.c.b16 %v2806, %v2806
    %v2833 = vpack.c.b16 %v2807, %v2807
    %v2834 = vpack.c.b16 %v2808, %v2808
    %v2835 = vpack.c.b16 %v2809, %v2809
    %v2836 = vpack.c.b16 %v2810, %v2810
    %v2837 = vpack.c.b16 %v2811, %v2811
    %v2838 = vpack.c.b16 %v2812, %v2812
    %v2839 = vpack.c.b16 %v2813, %v2813
    %v2840 = vpack.c.b16 %v2814, %v2814
    %v2841 = vpack.c.b16 %v2815, %v2815
    %v2842 = vpack.c.b16 %v2816, %v2816
    %v2843 = vpack.c.b16 %v2817, %v2817
    %v2844 = vpack.c.b16 %v2818, %v2818
    %v2845 = vpack.c.b16 %v2819, %v2819
    %v2846 = vpack.c.b16 %v2820, %v2820
    %v2847 = vpack.c.b16 %v2821, %v2821
    %v2848 = vpack.c.b16 %v2822, %v2822
    %v2849 = vpack.c.b16 %v2823, %v2823
    %v2850 = vpack.c.b16 %v2824, %v2824
    %v2851 = vpack.c.b16 %v2825, %v2825
    %v2852 = vpack.c.b16 %v2826, %v2826
    %v2853 = vpack.c.b16 %v2827, %v2827
    %v2854 = vpack.c.b16 %v2828, %v2828
    %v2855 = vpack.c.b16 %v2829, %v2829
    %2882 = vst [vmem:[%s2] sm:$0xf] %v2830
    %2883 = vst [vmem:[%s2 + $0x4] sm:$0xf] %v2831
    %2884 = vst [vmem:[%s2 + $0x8] sm:$0xf] %v2832
    %2885 = vst [vmem:[%s2 + $0xc] sm:$0xf] %v2833
    %2886 = vst [vmem:[%s2 + $0x10] sm:$0xf] %v2834
    %2887 = vst [vmem:[%s2 + $0x14] sm:$0xf] %v2835
    %2888 = vst [vmem:[%s2 + $0x18] sm:$0xf] %v2836
    %2889 = vst [vmem:[%s2 + $0x1c] sm:$0xf] %v2837
    %2890 = vst [vmem:[%s2 + $0x20] sm:$0xf] %v2838
    %2891 = vst [vmem:[%s2 + $0x24] sm:$0xf] %v2839
    %2892 = vst [vmem:[%s2 + $0x28] sm:$0xf] %v2840
    %2893 = vst [vmem:[%s2 + $0x2c] sm:$0xf] %v2841
    %2894 = vst [vmem:[%s2 + $0x30] sm:$0xf] %v2842
    %2895 = vst [vmem:[%s2 + $0x34] sm:$0xf] %v2843
    %2896 = vst [vmem:[%s2 + $0x38] sm:$0xf] %v2844
    %2897 = vst [vmem:[%s2 + $0x3c] sm:$0xf] %v2845
    %2898 = vst [vmem:[%s2 + $0x40] sm:$0xf] %v2846
    %2899 = vst [vmem:[%s2 + $0x44] sm:$0xf] %v2847
    %2900 = vst [vmem:[%s2 + $0x48] sm:$0xf] %v2848
    %2901 = vst [vmem:[%s2 + $0x4c] sm:$0xf] %v2849
    %2902 = vst [vmem:[%s2 + $0x50] sm:$0xf] %v2850
    %2903 = vst [vmem:[%s2 + $0x54] sm:$0xf] %v2851
    %2904 = vst [vmem:[%s2 + $0x58] sm:$0xf] %v2852
    %2905 = vst [vmem:[%s2 + $0x5c] sm:$0xf] %v2853
    %2906 = vst [vmem:[%s2 + $0x60] sm:$0xf] %v2854
    %2907 = vst [vmem:[%s2 + $0x64] sm:$0xf] %v2855
    // Predicated region
    $region14: #{_ae_forward.1} parent=1 // pred_check
      _
    $region15: #{_ae_forward.1} parent=1 // pred_check_branch
      %2909 = sbr.rel (0) target = $region17
    $region16: #{_ae_forward.1} parent=1 // pred_region
      _
    $region17: #{_ae_forward.1} parent=1 // pred_fallthru
      _
    // Predicated region
    $region18: #{_ae_forward.1} parent=1 // pred_check
      _
    $region19: #{_ae_forward.1} parent=1 // pred_check_branch
      %2911 = sbr.rel (0) target = $region21
    $region20: #{_ae_forward.1} parent=1 // pred_region
      _
    $region21: #{_ae_forward.1} parent=1 // pred_fallthru
      _
    %2912 = vsyncpa [#allocation3], 1

</llo_original>
